<compile_context>
chip_gen: v7x
topology: tpu7x:2x2x1
jax: 0.10.0
libtpu: 0.0.40
codegen_flags: <defaults>
</compile_context>

<pallas_src>
import functools
import math

import jax
import jax.numpy as jnp
from jax.experimental import pallas as pl
from jax.experimental.pallas import tpu as pltpu


def _round_up(x, m):
    return ((x + m - 1) // m) * m


def _erf_approx(x):
    # Abramowitz & Stegun 7.1.26, |err| < 1.5e-7 (float32-noise level).
    a1, a2, a3, a4, a5 = (0.254829592, -0.284496736, 1.421413741,
                          -1.453152027, 1.061405429)
    p = 0.3275911
    sign = jnp.where(x >= 0.0, 1.0, -1.0)
    ax = jnp.abs(x)
    d = 1.0 + p * ax
    # Approx reciprocal lands on the (otherwise free) EUP slot; one
    # Newton-Raphson step restores ~f32 accuracy with two cheap VALU ops.
    r = pl.reciprocal(d, approx=True)
    r = r * (2.0 - d * r)
    poly = ((((a5 * r + a4) * r + a3) * r + a2) * r + a1) * r
    return sign * (1.0 - poly * jnp.exp(-ax * ax))


def _gelu_exact(x):
    # torch.nn.GELU() default = exact erf-based GELU.
    return 0.5 * x * (1.0 + _erf_approx(x * (1.0 / math.sqrt(2.0))))


def _timeconder_kernel(t_ref, cp_ref, w_ref, b_ref, out_ref, *, layer_dims):
    """Fused embedding + MLP for one batch tile, transposed lane-dense layout.

    t_ref:   (1, tile_b)          time values (batch on lanes)
    cp_ref:  (emb_pad, 2)         col0 = coeff (duplicated), col1 = phase / phase+pi/2
    w_ref:   (n_lin, pad, pad)    zero-padded (out, in) weights, stacked
    b_ref:   (n_lin, pad, 1)      zero-padded biases, stacked
    out_ref: (out_dim, tile_b)
    layer_dims: static tuple of (fan_out_pad, fan_in_pad) per Linear
    """
    t = t_ref[...]                                  # (1, tile_b)
    coeff = cp_ref[:, 0:1]                          # (emb_pad, 1)
    phase = cp_ref[:, 1:2]                          # (emb_pad, 1)
    # rows [0,C) are sin, rows [C,2C) are cos (phase + pi/2); padded rows give
    # sin(0) = 0 which multiplies zero weight columns downstream.
    h = jnp.sin(coeff * t + phase)                  # (emb_pad, tile_b), lane-dense

    for i, (fo, fi) in enumerate(layer_dims):
        if i > 0:                                   # GELU before every Linear but the first
            h = _gelu_exact(h)
        w = w_ref[i][:fo, :fi]                      # (fo, fi), torch (out, in) layout
        b = b_ref[i][:fo, :]                        # (fo, 1)
        h = jnp.dot(w, h, preferred_element_type=jnp.float32) + b
    out_ref[...] = h.astype(out_ref.dtype)


def init_timeconder_params(key, channel, out_dim, num_layers):
    """Deterministic synthetic parameters with the same shapes/init as torch."""
    n_lin = num_layers + 1
    keys = jax.random.split(key, 1 + 2 * n_lin)
    params = {
        "timestep_coeff": jnp.linspace(0.1, 100.0, channel, dtype=jnp.float32)[None],
        "timestep_phase": jax.random.normal(keys[0], (1, channel), dtype=jnp.float32),
    }
    in_dims = [2 * channel] + [channel] * num_layers
    out_dims = [channel] * num_layers + [out_dim]
    layers = []
    for i in range(n_lin):
        fan_in, fan_out = in_dims[i], out_dims[i]
        if i == n_lin - 1:
            # layers[-1].weight.data.fill_(0.0); layers[-1].bias.data.fill_(0.01)
            w = jnp.zeros((fan_out, fan_in), jnp.float32)
            b = jnp.full((fan_out,), 0.01, jnp.float32)
        else:
            bound = 1.0 / math.sqrt(fan_in)
            w = jax.random.uniform(keys[1 + 2 * i], (fan_out, fan_in),
                                   jnp.float32, -bound, bound)
            b = jax.random.uniform(keys[2 + 2 * i], (fan_out,),
                                   jnp.float32, -bound, bound)
        layers.append((w, b))
    params["layers"] = layers
    return params


def pack_timeconder_params(params):
    """One-time packing of all parameters into 3 kernel operands (hoisted out
    of the per-call forward path)."""
    layers = params["layers"]
    n_lin = len(layers)
    channel = params["timestep_coeff"].shape[-1]
    out_dim = layers[-1][0].shape[0]

    emb_pad = _round_up(2 * channel, 8)
    hid_pad = _round_up(channel, 8)
    pad_dim = max(emb_pad, hid_pad, _round_up(out_dim, 8))

    coeff = params["timestep_coeff"].reshape(-1).astype(jnp.float32)
    phase = params["timestep_phase"].reshape(-1).astype(jnp.float32)
    cp = jnp.zeros((emb_pad, 2), jnp.float32)
    cp = cp.at[:channel, 0].set(coeff)
    cp = cp.at[channel:2 * channel, 0].set(coeff)
    cp = cp.at[:channel, 1].set(phase)
    cp = cp.at[channel:2 * channel, 1].set(phase + jnp.float32(math.pi / 2.0))

    w_stack = jnp.zeros((n_lin, pad_dim, pad_dim), jnp.float32)
    b_stack = jnp.zeros((n_lin, pad_dim, 1), jnp.float32)
    for i, (w, b) in enumerate(layers):
        fo, fi = w.shape
        w_stack = w_stack.at[i, :fo, :fi].set(w.astype(jnp.float32))
        b_stack = b_stack.at[i, :fo, 0].set(b.astype(jnp.float32))

    fo_list = [hid_pad] * (n_lin - 1) + [out_dim]
    fi_list = [emb_pad] + fo_list[:-1]
    return {
        "cp": cp,
        "w_stack": w_stack,
        "b_stack": b_stack,
        "out_dim": out_dim,
        "layer_dims": tuple(zip(fo_list, fi_list)),
    }


def _choose_tile_b(B, tile_b):
    # lane-dense tile: multiple of 128
    tile_b = _round_up(max(1, min(tile_b, B)), 128)
    # v7x megacore: give the 2 TensorCores at least 2 "parallel" grid steps
    # whenever the batch is big enough to split (near-free on v5e/v6e).
    if B > 128 and _round_up(B, tile_b) // tile_b < 2:
        tile_b = _round_up(pl.cdiv(B, 2), 128)
    return tile_b


def time_conder_forward(t, packed, tile_b=8192):
    t_row = t.astype(jnp.float32).reshape(1, -1)          # batch on lanes
    B = t_row.shape[1]

    cp = packed["cp"]
    w_stack = packed["w_stack"]
    b_stack = packed["b_stack"]
    out_dim = packed["out_dim"]
    layer_dims = packed["layer_dims"]
    n_lin, pad_dim = w_stack.shape[0], w_stack.shape[-1]
    emb_pad = cp.shape[0]

    tile_b = _choose_tile_b(B, tile_b)
    b_padded = _round_up(B, tile_b)
    t_pad = jnp.pad(t_row, ((0, 0), (0, b_padded - B)))
    grid = (b_padded // tile_b,)

    flops = 2 * b_padded * sum(fo * fi for fo, fi in layer_dims)
    transcendentals = b_padded * (emb_pad + 2 * sum(fi for _, fi in layer_dims[1:]))
    bytes_accessed = 4 * (b_padded * (1 + out_dim)
                          + int(cp.size) + int(w_stack.size) + int(b_stack.size))

    out = pl.pallas_call(
        functools.partial(_timeconder_kernel, layer_dims=layer_dims),
        out_shape=jax.ShapeDtypeStruct((out_dim, b_padded), jnp.float32),
        grid=grid,
        in_specs=[
            pl.BlockSpec((1, tile_b), lambda i: (0, i)),                   # t: streamed
            pl.BlockSpec((emb_pad, 2), lambda i: (0, 0)),                  # coeff/phase
            pl.BlockSpec((n_lin, pad_dim, pad_dim), lambda i: (0, 0, 0)),  # weights
            pl.BlockSpec((n_lin, pad_dim, 1), lambda i: (0, 0, 0)),        # biases
        ],
        out_specs=pl.BlockSpec((out_dim, tile_b), lambda i: (0, i)),       # lane-dense
        compiler_params=pltpu.CompilerParams(
            dimension_semantics=("parallel",),
            vmem_limit_bytes=48 * 1024 * 1024),
        cost_estimate=pl.CostEstimate(
            flops=flops,
            transcendentals=transcendentals,
            bytes_accessed=bytes_accessed),
    )(t_pad, cp, w_stack, b_stack)
    return out[:, :B].T                                   # (B, out_dim)


def time_conder_reference(t, params):
    """Pure-JAX reference matching the torch forward (exact erf GELU)."""
    arg = params["timestep_coeff"] * t.astype(jnp.float32) + params["timestep_phase"]
    h = jnp.concatenate([jnp.sin(arg), jnp.cos(arg)], axis=-1)
    for i, (w, b) in enumerate(params["layers"]):
        if i > 0:
            h = 0.5 * h * (1.0 + jax.scipy.special.erf(h / jnp.sqrt(2.0)))
        h = jnp.dot(h, w.T, precision=jax.lax.Precision.HIGHEST) + b
    return h


if __name__ == "__main__":
    channel, out_dim, num_layers = 32, 8, 3

    key = jax.random.PRNGKey(0)
    k_params, k_t1, k_t2, k_w, k_b = jax.random.split(key, 5)
    params = init_timeconder_params(k_params, channel, out_dim, num_layers)
    packed = pack_timeconder_params(params)

    # Test 1: small batch (20 rows -> single padded 128-lane tile), default init
    # (zeroed last layer, as in the torch module).
    t1 = jax.random.uniform(k_t1, (20, 1), dtype=jnp.float32)
    out1 = jax.block_until_ready(time_conder_forward(t1, packed))
    ref1 = time_conder_reference(t1, params)
    assert out1.shape == (20, out_dim), out1.shape
    assert jnp.allclose(out1, ref1, atol=1e-5, rtol=1e-3), (out1, ref1)

    # Test 2: non-degenerate final layer (the default init zero-fills the last
    # weight, which would make the output a constant 0.01), batch=300 with
    # tile_b=128 so the grid has 3 steps including a padded final tile.
    w_last, b_last = params["layers"][-1]
    bound = 1.0 / math.sqrt(w_last.shape[1])
    params_rnd = dict(params)
    params_rnd["layers"] = params["layers"][:-1] + [(
        jax.random.uniform(k_w, w_last.shape, jnp.float32, -bound, bound),
        jax.random.uniform(k_b, b_last.shape, jnp.float32, -bound, bound))]
    packed_rnd = pack_timeconder_params(params_rnd)

    t2 = jax.random.uniform(k_t2, (300, 1), dtype=jnp.float32)
    out2 = jax.block_until_ready(time_conder_forward(t2, packed_rnd, tile_b=128))
    ref2 = time_conder_reference(t2, params_rnd)
    assert out2.shape == (300, out_dim), out2.shape
    assert jnp.allclose(out2, ref2, atol=1e-5, rtol=1e-3), (out2, ref2)

    print("KERNEL_OK")
</pallas_src>

<mosaic_0001>
module attributes {stable_mosaic.version = 11 : i64} {
  func.func @_timeconder_kernel(%arg0: i32, %arg1: memref<1x128xf32, #tpu.memory_space<vmem>>, %arg2: memref<64x2xf32, #tpu.memory_space<vmem>>, %arg3: memref<4x64x64xf32, #tpu.memory_space<vmem>>, %arg4: memref<4x64x1xf32, #tpu.memory_space<vmem>>, %arg5: memref<8x128xf32, #tpu.memory_space<vmem>>) attributes {dimension_semantics = [#tpu.dimension_semantics<parallel>], iteration_bounds = array<i64: 1>, scalar_prefetch = 0 : i64, scratch_operands = 0 : i64, tpu.core_type = #tpu.core_type<tc>, window_params = [{transform_indices = @transform_0, window_bounds = array<i64: 1, 128>}, {pipeline_mode = #tpu.pipeline_mode<synchronous>, transform_indices = @transform_1, window_bounds = array<i64: 64, 2>}, {pipeline_mode = #tpu.pipeline_mode<synchronous>, transform_indices = @transform_2, window_bounds = array<i64: 4, 64, 64>}, {pipeline_mode = #tpu.pipeline_mode<synchronous>, transform_indices = @transform_3, window_bounds = array<i64: 4, 64, 1>}, {transform_indices = @transform_4, window_bounds = array<i64: 8, 128>}]} {
    %c0 = arith.constant 0 : index
    %c0_0 = arith.constant 0 : index
    %0 = vector.load %arg1[%c0, %c0_0] : memref<1x128xf32, #tpu.memory_space<vmem>>, vector<1x128xf32>
    %c0_1 = arith.constant 0 : index
    %c0_2 = arith.constant 0 : index
    %1 = vector.load %arg2[%c0_1, %c0_2] : memref<64x2xf32, #tpu.memory_space<vmem>>, vector<64x1xf32>
    %c0_3 = arith.constant 0 : index
    %c1 = arith.constant 1 : index
    %2 = vector.load %arg2[%c0_3, %c1] : memref<64x2xf32, #tpu.memory_space<vmem>>, vector<64x1xf32>
    %3 = vector.broadcast %1 : vector<64x1xf32> to vector<64x128xf32>
    %4 = vector.broadcast %0 : vector<1x128xf32> to vector<64x128xf32>
    %5 = arith.mulf %3, %4 : vector<64x128xf32>
    %6 = vector.broadcast %2 : vector<64x1xf32> to vector<64x128xf32>
    %7 = arith.addf %5, %6 : vector<64x128xf32>
    %8 = math.sin %7 : vector<64x128xf32>
    %c0_4 = arith.constant 0 : index
    %c0_5 = arith.constant 0 : index
    %c0_6 = arith.constant 0 : index
    %9 = vector.load %arg3[%c0_4, %c0_5, %c0_6] : memref<4x64x64xf32, #tpu.memory_space<vmem>>, vector<1x64x64xf32>
    %10 = vector.shape_cast %9 : vector<1x64x64xf32> to vector<64x64xf32>
    %11 = vector.extract_strided_slice %10 {offsets = [0, 0], sizes = [32, 64], strides = [1, 1]} : vector<64x64xf32> to vector<32x64xf32>
    %c0_7 = arith.constant 0 : index
    %c0_8 = arith.constant 0 : index
    %c0_9 = arith.constant 0 : index
    %12 = vector.load %arg4[%c0_7, %c0_8, %c0_9] : memref<4x64x1xf32, #tpu.memory_space<vmem>>, vector<1x64x1xf32>
    %13 = vector.shape_cast %12 : vector<1x64x1xf32> to vector<64x1xf32>
    %14 = vector.extract_strided_slice %13 {offsets = [0, 0], sizes = [32, 1], strides = [1, 1]} : vector<64x1xf32> to vector<32x1xf32>
    %cst = arith.constant dense<0.000000e+00> : vector<32x128xf32>
    %15 = tpu.matmul %11, %8, %cst {dimension_numbers = #tpu.dot_dimension_numbers<[1], [0], [0], [1], [0, 0, 1, 1], [], []>} : vector<32x64xf32>, vector<64x128xf32>, vector<32x128xf32> -> vector<32x128xf32>
    %16 = vector.broadcast %14 : vector<32x1xf32> to vector<32x128xf32>
    %17 = arith.addf %15, %16 : vector<32x128xf32>
    %cst_10 = arith.constant 5.000000e-01 : f32
    %18 = vector.broadcast %cst_10 : f32 to vector<32x128xf32>
    %19 = arith.mulf %18, %17 : vector<32x128xf32>
    %cst_11 = arith.constant 0.707106769 : f32
    %20 = vector.broadcast %cst_11 : f32 to vector<32x128xf32>
    %21 = arith.mulf %17, %20 : vector<32x128xf32>
    %cst_12 = arith.constant 0.000000e+00 : f32
    %22 = vector.broadcast %cst_12 : f32 to vector<32x128xf32>
    %23 = arith.cmpf oge, %21, %22 : vector<32x128xf32>
    %cst_13 = arith.constant 1.000000e+00 : f32
    %cst_14 = arith.constant -1.000000e+00 : f32
    %24 = vector.broadcast %cst_13 : f32 to vector<32x128xf32>
    %25 = vector.broadcast %cst_14 : f32 to vector<32x128xf32>
    %26 = arith.select %23, %24, %25 : vector<32x128xi1>, vector<32x128xf32>
    %27 = math.absf %21 : vector<32x128xf32>
    %cst_15 = arith.constant 0.327591091 : f32
    %28 = vector.broadcast %cst_15 : f32 to vector<32x128xf32>
    %29 = arith.mulf %28, %27 : vector<32x128xf32>
    %cst_16 = arith.constant 1.000000e+00 : f32
    %30 = vector.broadcast %cst_16 : f32 to vector<32x128xf32>
    %31 = arith.addf %30, %29 : vector<32x128xf32>
    %32 = tpu.reciprocal %31 {approx = true} : vector<32x128xf32> -> vector<32x128xf32>
    %33 = arith.mulf %31, %32 : vector<32x128xf32>
    %cst_17 = arith.constant 2.000000e+00 : f32
    %34 = vector.broadcast %cst_17 : f32 to vector<32x128xf32>
    %35 = arith.subf %34, %33 : vector<32x128xf32>
    %36 = arith.mulf %32, %35 : vector<32x128xf32>
    %cst_18 = arith.constant 1.06140542 : f32
    %37 = vector.broadcast %cst_18 : f32 to vector<32x128xf32>
    %38 = arith.mulf %37, %36 : vector<32x128xf32>
    %cst_19 = arith.constant -1.45315206 : f32
    %39 = vector.broadcast %cst_19 : f32 to vector<32x128xf32>
    %40 = arith.addf %38, %39 : vector<32x128xf32>
    %41 = arith.mulf %40, %36 : vector<32x128xf32>
    %cst_20 = arith.constant 1.42141378 : f32
    %42 = vector.broadcast %cst_20 : f32 to vector<32x128xf32>
    %43 = arith.addf %41, %42 : vector<32x128xf32>
    %44 = arith.mulf %43, %36 : vector<32x128xf32>
    %cst_21 = arith.constant -0.284496725 : f32
    %45 = vector.broadcast %cst_21 : f32 to vector<32x128xf32>
    %46 = arith.addf %44, %45 : vector<32x128xf32>
    %47 = arith.mulf %46, %36 : vector<32x128xf32>
    %cst_22 = arith.constant 0.254829586 : f32
    %48 = vector.broadcast %cst_22 : f32 to vector<32x128xf32>
    %49 = arith.addf %47, %48 : vector<32x128xf32>
    %50 = arith.mulf %49, %36 : vector<32x128xf32>
    %cst_23 = arith.constant 0.000000e+00 : f32
    %51 = vector.broadcast %cst_23 : f32 to vector<32x128xf32>
    %52 = arith.subf %51, %27 : vector<32x128xf32>
    %53 = arith.mulf %52, %27 : vector<32x128xf32>
    %54 = math.exp %53 : vector<32x128xf32>
    %55 = arith.mulf %50, %54 : vector<32x128xf32>
    %cst_24 = arith.constant 1.000000e+00 : f32
    %56 = vector.broadcast %cst_24 : f32 to vector<32x128xf32>
    %57 = arith.subf %56, %55 : vector<32x128xf32>
    %58 = arith.mulf %26, %57 : vector<32x128xf32>
    %cst_25 = arith.constant 1.000000e+00 : f32
    %59 = vector.broadcast %cst_25 : f32 to vector<32x128xf32>
    %60 = arith.addf %59, %58 : vector<32x128xf32>
    %61 = arith.mulf %19, %60 : vector<32x128xf32>
    %c1_26 = arith.constant 1 : index
    %c0_27 = arith.constant 0 : index
    %c0_28 = arith.constant 0 : index
    %62 = vector.load %arg3[%c1_26, %c0_27, %c0_28] : memref<4x64x64xf32, #tpu.memory_space<vmem>>, vector<1x64x64xf32>
    %63 = vector.shape_cast %62 : vector<1x64x64xf32> to vector<64x64xf32>
    %64 = vector.extract_strided_slice %63 {offsets = [0, 0], sizes = [32, 32], strides = [1, 1]} : vector<64x64xf32> to vector<32x32xf32>
    %c1_29 = arith.constant 1 : index
    %c0_30 = arith.constant 0 : index
    %c0_31 = arith.constant 0 : index
    %65 = vector.load %arg4[%c1_29, %c0_30, %c0_31] : memref<4x64x1xf32, #tpu.memory_space<vmem>>, vector<1x64x1xf32>
    %66 = vector.shape_cast %65 : vector<1x64x1xf32> to vector<64x1xf32>
    %67 = vector.extract_strided_slice %66 {offsets = [0, 0], sizes = [32, 1], strides = [1, 1]} : vector<64x1xf32> to vector<32x1xf32>
    %cst_32 = arith.constant dense<0.000000e+00> : vector<32x128xf32>
    %68 = tpu.matmul %64, %61, %cst_32 {dimension_numbers = #tpu.dot_dimension_numbers<[1], [0], [0], [1], [0, 0, 1, 1], [], []>} : vector<32x32xf32>, vector<32x128xf32>, vector<32x128xf32> -> vector<32x128xf32>
    %69 = vector.broadcast %67 : vector<32x1xf32> to vector<32x128xf32>
    %70 = arith.addf %68, %69 : vector<32x128xf32>
    %cst_33 = arith.constant 5.000000e-01 : f32
    %71 = vector.broadcast %cst_33 : f32 to vector<32x128xf32>
    %72 = arith.mulf %71, %70 : vector<32x128xf32>
    %cst_34 = arith.constant 0.707106769 : f32
    %73 = vector.broadcast %cst_34 : f32 to vector<32x128xf32>
    %74 = arith.mulf %70, %73 : vector<32x128xf32>
    %cst_35 = arith.constant 0.000000e+00 : f32
    %75 = vector.broadcast %cst_35 : f32 to vector<32x128xf32>
    %76 = arith.cmpf oge, %74, %75 : vector<32x128xf32>
    %cst_36 = arith.constant 1.000000e+00 : f32
    %cst_37 = arith.constant -1.000000e+00 : f32
    %77 = vector.broadcast %cst_36 : f32 to vector<32x128xf32>
    %78 = vector.broadcast %cst_37 : f32 to vector<32x128xf32>
    %79 = arith.select %76, %77, %78 : vector<32x128xi1>, vector<32x128xf32>
    %80 = math.absf %74 : vector<32x128xf32>
    %cst_38 = arith.constant 0.327591091 : f32
    %81 = vector.broadcast %cst_38 : f32 to vector<32x128xf32>
    %82 = arith.mulf %81, %80 : vector<32x128xf32>
    %cst_39 = arith.constant 1.000000e+00 : f32
    %83 = vector.broadcast %cst_39 : f32 to vector<32x128xf32>
    %84 = arith.addf %83, %82 : vector<32x128xf32>
    %85 = tpu.reciprocal %84 {approx = true} : vector<32x128xf32> -> vector<32x128xf32>
    %86 = arith.mulf %84, %85 : vector<32x128xf32>
    %cst_40 = arith.constant 2.000000e+00 : f32
    %87 = vector.broadcast %cst_40 : f32 to vector<32x128xf32>
    %88 = arith.subf %87, %86 : vector<32x128xf32>
    %89 = arith.mulf %85, %88 : vector<32x128xf32>
    %cst_41 = arith.constant 1.06140542 : f32
    %90 = vector.broadcast %cst_41 : f32 to vector<32x128xf32>
    %91 = arith.mulf %90, %89 : vector<32x128xf32>
    %cst_42 = arith.constant -1.45315206 : f32
    %92 = vector.broadcast %cst_42 : f32 to vector<32x128xf32>
    %93 = arith.addf %91, %92 : vector<32x128xf32>
    %94 = arith.mulf %93, %89 : vector<32x128xf32>
    %cst_43 = arith.constant 1.42141378 : f32
    %95 = vector.broadcast %cst_43 : f32 to vector<32x128xf32>
    %96 = arith.addf %94, %95 : vector<32x128xf32>
    %97 = arith.mulf %96, %89 : vector<32x128xf32>
    %cst_44 = arith.constant -0.284496725 : f32
    %98 = vector.broadcast %cst_44 : f32 to vector<32x128xf32>
    %99 = arith.addf %97, %98 : vector<32x128xf32>
    %100 = arith.mulf %99, %89 : vector<32x128xf32>
    %cst_45 = arith.constant 0.254829586 : f32
    %101 = vector.broadcast %cst_45 : f32 to vector<32x128xf32>
    %102 = arith.addf %100, %101 : vector<32x128xf32>
    %103 = arith.mulf %102, %89 : vector<32x128xf32>
    %cst_46 = arith.constant 0.000000e+00 : f32
    %104 = vector.broadcast %cst_46 : f32 to vector<32x128xf32>
    %105 = arith.subf %104, %80 : vector<32x128xf32>
    %106 = arith.mulf %105, %80 : vector<32x128xf32>
    %107 = math.exp %106 : vector<32x128xf32>
    %108 = arith.mulf %103, %107 : vector<32x128xf32>
    %cst_47 = arith.constant 1.000000e+00 : f32
    %109 = vector.broadcast %cst_47 : f32 to vector<32x128xf32>
    %110 = arith.subf %109, %108 : vector<32x128xf32>
    %111 = arith.mulf %79, %110 : vector<32x128xf32>
    %cst_48 = arith.constant 1.000000e+00 : f32
    %112 = vector.broadcast %cst_48 : f32 to vector<32x128xf32>
    %113 = arith.addf %112, %111 : vector<32x128xf32>
    %114 = arith.mulf %72, %113 : vector<32x128xf32>
    %c2 = arith.constant 2 : index
    %c0_49 = arith.constant 0 : index
    %c0_50 = arith.constant 0 : index
    %115 = vector.load %arg3[%c2, %c0_49, %c0_50] : memref<4x64x64xf32, #tpu.memory_space<vmem>>, vector<1x64x64xf32>
    %116 = vector.shape_cast %115 : vector<1x64x64xf32> to vector<64x64xf32>
    %117 = vector.extract_strided_slice %116 {offsets = [0, 0], sizes = [32, 32], strides = [1, 1]} : vector<64x64xf32> to vector<32x32xf32>
    %c2_51 = arith.constant 2 : index
    %c0_52 = arith.constant 0 : index
    %c0_53 = arith.constant 0 : index
    %118 = vector.load %arg4[%c2_51, %c0_52, %c0_53] : memref<4x64x1xf32, #tpu.memory_space<vmem>>, vector<1x64x1xf32>
    %119 = vector.shape_cast %118 : vector<1x64x1xf32> to vector<64x1xf32>
    %120 = vector.extract_strided_slice %119 {offsets = [0, 0], sizes = [32, 1], strides = [1, 1]} : vector<64x1xf32> to vector<32x1xf32>
    %cst_54 = arith.constant dense<0.000000e+00> : vector<32x128xf32>
    %121 = tpu.matmul %117, %114, %cst_54 {dimension_numbers = #tpu.dot_dimension_numbers<[1], [0], [0], [1], [0, 0, 1, 1], [], []>} : vector<32x32xf32>, vector<32x128xf32>, vector<32x128xf32> -> vector<32x128xf32>
    %122 = vector.broadcast %120 : vector<32x1xf32> to vector<32x128xf32>
    %123 = arith.addf %121, %122 : vector<32x128xf32>
    %cst_55 = arith.constant 5.000000e-01 : f32
    %124 = vector.broadcast %cst_55 : f32 to vector<32x128xf32>
    %125 = arith.mulf %124, %123 : vector<32x128xf32>
    %cst_56 = arith.constant 0.707106769 : f32
    %126 = vector.broadcast %cst_56 : f32 to vector<32x128xf32>
    %127 = arith.mulf %123, %126 : vector<32x128xf32>
    %cst_57 = arith.constant 0.000000e+00 : f32
    %128 = vector.broadcast %cst_57 : f32 to vector<32x128xf32>
    %129 = arith.cmpf oge, %127, %128 : vector<32x128xf32>
    %cst_58 = arith.constant 1.000000e+00 : f32
    %cst_59 = arith.constant -1.000000e+00 : f32
    %130 = vector.broadcast %cst_58 : f32 to vector<32x128xf32>
    %131 = vector.broadcast %cst_59 : f32 to vector<32x128xf32>
    %132 = arith.select %129, %130, %131 : vector<32x128xi1>, vector<32x128xf32>
    %133 = math.absf %127 : vector<32x128xf32>
    %cst_60 = arith.constant 0.327591091 : f32
    %134 = vector.broadcast %cst_60 : f32 to vector<32x128xf32>
    %135 = arith.mulf %134, %133 : vector<32x128xf32>
    %cst_61 = arith.constant 1.000000e+00 : f32
    %136 = vector.broadcast %cst_61 : f32 to vector<32x128xf32>
    %137 = arith.addf %136, %135 : vector<32x128xf32>
    %138 = tpu.reciprocal %137 {approx = true} : vector<32x128xf32> -> vector<32x128xf32>
    %139 = arith.mulf %137, %138 : vector<32x128xf32>
    %cst_62 = arith.constant 2.000000e+00 : f32
    %140 = vector.broadcast %cst_62 : f32 to vector<32x128xf32>
    %141 = arith.subf %140, %139 : vector<32x128xf32>
    %142 = arith.mulf %138, %141 : vector<32x128xf32>
    %cst_63 = arith.constant 1.06140542 : f32
    %143 = vector.broadcast %cst_63 : f32 to vector<32x128xf32>
    %144 = arith.mulf %143, %142 : vector<32x128xf32>
    %cst_64 = arith.constant -1.45315206 : f32
    %145 = vector.broadcast %cst_64 : f32 to vector<32x128xf32>
    %146 = arith.addf %144, %145 : vector<32x128xf32>
    %147 = arith.mulf %146, %142 : vector<32x128xf32>
    %cst_65 = arith.constant 1.42141378 : f32
    %148 = vector.broadcast %cst_65 : f32 to vector<32x128xf32>
    %149 = arith.addf %147, %148 : vector<32x128xf32>
    %150 = arith.mulf %149, %142 : vector<32x128xf32>
    %cst_66 = arith.constant -0.284496725 : f32
    %151 = vector.broadcast %cst_66 : f32 to vector<32x128xf32>
    %152 = arith.addf %150, %151 : vector<32x128xf32>
    %153 = arith.mulf %152, %142 : vector<32x128xf32>
    %cst_67 = arith.constant 0.254829586 : f32
    %154 = vector.broadcast %cst_67 : f32 to vector<32x128xf32>
    %155 = arith.addf %153, %154 : vector<32x128xf32>
    %156 = arith.mulf %155, %142 : vector<32x128xf32>
    %cst_68 = arith.constant 0.000000e+00 : f32
    %157 = vector.broadcast %cst_68 : f32 to vector<32x128xf32>
    %158 = arith.subf %157, %133 : vector<32x128xf32>
    %159 = arith.mulf %158, %133 : vector<32x128xf32>
    %160 = math.exp %159 : vector<32x128xf32>
    %161 = arith.mulf %156, %160 : vector<32x128xf32>
    %cst_69 = arith.constant 1.000000e+00 : f32
    %162 = vector.broadcast %cst_69 : f32 to vector<32x128xf32>
    %163 = arith.subf %162, %161 : vector<32x128xf32>
    %164 = arith.mulf %132, %163 : vector<32x128xf32>
    %cst_70 = arith.constant 1.000000e+00 : f32
    %165 = vector.broadcast %cst_70 : f32 to vector<32x128xf32>
    %166 = arith.addf %165, %164 : vector<32x128xf32>
    %167 = arith.mulf %125, %166 : vector<32x128xf32>
    %c3 = arith.constant 3 : index
    %c0_71 = arith.constant 0 : index
    %c0_72 = arith.constant 0 : index
    %168 = vector.load %arg3[%c3, %c0_71, %c0_72] : memref<4x64x64xf32, #tpu.memory_space<vmem>>, vector<1x64x64xf32>
    %169 = vector.shape_cast %168 : vector<1x64x64xf32> to vector<64x64xf32>
    %170 = vector.extract_strided_slice %169 {offsets = [0, 0], sizes = [8, 32], strides = [1, 1]} : vector<64x64xf32> to vector<8x32xf32>
    %c3_73 = arith.constant 3 : index
    %c0_74 = arith.constant 0 : index
    %c0_75 = arith.constant 0 : index
    %171 = vector.load %arg4[%c3_73, %c0_74, %c0_75] : memref<4x64x1xf32, #tpu.memory_space<vmem>>, vector<1x64x1xf32>
    %172 = vector.shape_cast %171 : vector<1x64x1xf32> to vector<64x1xf32>
    %173 = vector.extract_strided_slice %172 {offsets = [0, 0], sizes = [8, 1], strides = [1, 1]} : vector<64x1xf32> to vector<8x1xf32>
    %cst_76 = arith.constant dense<0.000000e+00> : vector<8x128xf32>
    %174 = tpu.matmul %170, %167, %cst_76 {dimension_numbers = #tpu.dot_dimension_numbers<[1], [0], [0], [1], [0, 0, 1, 1], [], []>} : vector<8x32xf32>, vector<32x128xf32>, vector<8x128xf32> -> vector<8x128xf32>
    %175 = vector.broadcast %173 : vector<8x1xf32> to vector<8x128xf32>
    %176 = arith.addf %174, %175 : vector<8x128xf32>
    %c0_77 = arith.constant 0 : index
    %c0_78 = arith.constant 0 : index
    %177 = vector.load %arg5[%c0_77, %c0_78] : memref<8x128xf32, #tpu.memory_space<vmem>>, vector<8x128xf32>
    tpu.vector_store %arg5[%c0_77, %c0_78], %176 {strides = array<i32>} : memref<8x128xf32, #tpu.memory_space<vmem>>, vector<8x128xf32>,
    return
  }
  func.func @transform_0(%arg0: i32) -> (i32, i32) {
    %c0_i32 = arith.constant 0 : i32
    %c0_i32_0 = arith.constant 0 : i32
    return %c0_i32, %arg0 : i32, i32
  }
  func.func @transform_1(%arg0: i32) -> (i32, i32) {
    %c0_i32 = arith.constant 0 : i32
    %c0_i32_0 = arith.constant 0 : i32
    %c0_i32_1 = arith.constant 0 : i32
    return %c0_i32, %c0_i32_0 : i32, i32
  }
  func.func @transform_2(%arg0: i32) -> (i32, i32, i32) {
    %c0_i32 = arith.constant 0 : i32
    %c0_i32_0 = arith.constant 0 : i32
    %c0_i32_1 = arith.constant 0 : i32
    %c0_i32_2 = arith.constant 0 : i32
    return %c0_i32, %c0_i32_0, %c0_i32_1 : i32, i32, i32
  }
  func.func @transform_3(%arg0: i32) -> (i32, i32, i32) {
    %c0_i32 = arith.constant 0 : i32
    %c0_i32_0 = arith.constant 0 : i32
    %c0_i32_1 = arith.constant 0 : i32
    %c0_i32_2 = arith.constant 0 : i32
    return %c0_i32, %c0_i32_0, %c0_i32_1 : i32, i32, i32
  }
  func.func @transform_4(%arg0: i32) -> (i32, i32) {
    %c0_i32 = arith.constant 0 : i32
    %c0_i32_0 = arith.constant 0 : i32
    return %c0_i32, %arg0 : i32, i32
  }
}

</mosaic_0001>

<llo_original>
// kernel: tpu_custom_call.1
$region0: #{tpu_custom_call.1}
  #allocation0 [shape = 'u32[]', space=smem, size = 0x4, offset = 0x4, fixed_abs, tag = 'smem constant byte address 0x4 - core index']
  #allocation1 [shape = 'u32[144,128]{1,0:T(1,128)}', space=vmem, size = 0x12000, scoped, tag = 'internal scratch']
  %s0 = inlined_call_operand.vmem [shape: f32[1,128], index: 0, kind: input, shape index: {}]
  %s1 = inlined_call_operand.vmem [shape: f32[64,2], index: 1, kind: input, shape index: {}]
  %s2 = inlined_call_operand.vmem [shape: f32[4,64,64], index: 2, kind: input, shape index: {}]
  %s3 = inlined_call_operand.vmem [shape: f32[4,64,1], index: 3, kind: input, shape index: {}]
  %s4 = inlined_call_operand.hbm [shape: f32[8,128], index: 4, kind: output, shape index: {}]
  %s5 = sld [smem:[#allocation0]]
  $region26: #{tpu_custom_call.1} parent=0
    _
  %s7 = ssub.s32 1, %s5
  %s8 = scalar_select 0, %s7, %s5
  $region1: #{tpu_custom_call.1} parent=0
    #allocation2 [shape = 'u8[4096]{0}', space=vmem, size = 0x1000, scoped, tag = 'output window, operand 0, single buffered']
    #allocation3 [shape = 's32[1]{0}', space=sflag, size = 0x4, scoped, tag = 'scoped memory for tpu_custom_call.1']
    %9 = vsyncpa [#allocation3], 0
    // Predicated region
    $region2: #{tpu_custom_call.1} parent=1 // pred_check
      _
    $region3: #{tpu_custom_call.1} parent=1 // pred_check_branch
      %11 = sbr.rel (0) target = $region5
    $region4: #{tpu_custom_call.1} parent=1 // pred_region
      _
    $region5: #{tpu_custom_call.1} parent=1 // pred_fallthru
      _
    // Predicated region
    $region6: #{tpu_custom_call.1} parent=1 // pred_check
      _
    $region7: #{tpu_custom_call.1} parent=1 // pred_check_branch
      %13 = sbr.rel (0) target = $region9
    $region8: #{tpu_custom_call.1} parent=1 // pred_region
      _
    $region9: #{tpu_custom_call.1} parent=1 // pred_fallthru
      _
    // Predicated region
    $region10: #{tpu_custom_call.1} parent=1 // pred_check
      _
    $region11: #{tpu_custom_call.1} parent=1 // pred_check_branch
      %15 = sbr.rel (0) target = $region13
    $region12: #{tpu_custom_call.1} parent=1 // pred_region
      _
    $region13: #{tpu_custom_call.1} parent=1 // pred_fallthru
      _
    // Predicated region
    $region14: #{tpu_custom_call.1} parent=1 // pred_check
      _
    $region15: #{tpu_custom_call.1} parent=1 // pred_check_branch
      %17 = sbr.rel (0) target = $region17
    $region16: #{tpu_custom_call.1} parent=1 // pred_region
      _
    $region17: #{tpu_custom_call.1} parent=1 // pred_fallthru
      _
    %v18 = vld [vmem:[%s0] sm:$0x1]
    %v19 = vld [vmem:[%s1] sm:$0xff]
    %v20 = vld [vmem:[%s1 + $0x8] sm:$0xff]
    %v21 = vld [vmem:[%s1 + $0x10] sm:$0xff]
    %v22 = vld [vmem:[%s1 + $0x18] sm:$0xff]
    %v23 = vld [vmem:[%s1 + $0x20] sm:$0xff]
    %v24 = vld [vmem:[%s1 + $0x28] sm:$0xff]
    %v25 = vld [vmem:[%s1 + $0x30] sm:$0xff]
    %v26 = vld [vmem:[%s1 + $0x38] sm:$0xff]
    %28 = vset.pattern.permute.xlu0 0
    %29 = vperm.xlu0 %28, %v19
    %v30 = vpop.permute.xlu0 %29
    %33 = vset.pattern.permute.xlu0 0
    %34 = vperm.xlu0 %33, %v20
    %v35 = vpop.permute.xlu0 %34
    %38 = vset.pattern.permute.xlu0 0
    %39 = vperm.xlu0 %38, %v21
    %v40 = vpop.permute.xlu0 %39
    %43 = vset.pattern.permute.xlu0 0
    %44 = vperm.xlu0 %43, %v22
    %v45 = vpop.permute.xlu0 %44
    %48 = vset.pattern.permute.xlu0 0
    %49 = vperm.xlu0 %48, %v23
    %v50 = vpop.permute.xlu0 %49
    %53 = vset.pattern.permute.xlu0 0
    %54 = vperm.xlu0 %53, %v24
    %v55 = vpop.permute.xlu0 %54
    %58 = vset.pattern.permute.xlu0 0
    %59 = vperm.xlu0 %58, %v25
    %v60 = vpop.permute.xlu0 %59
    %63 = vset.pattern.permute.xlu0 0
    %64 = vperm.xlu0 %63, %v26
    %v65 = vpop.permute.xlu0 %64
    %v68 = vlaneseq
    %v69 = vshrl.u32 %v68, 7
    %v70 = vsub.s32 0, %v69
    %v71 = vrot.slane %v18, %v70
    %v73 = vmul.f32 %v30, %v71
    %v74 = vmul.f32 %v35, %v71
    %v75 = vmul.f32 %v40, %v71
    %v76 = vmul.f32 %v45, %v71
    %v77 = vmul.f32 %v50, %v71
    %v78 = vmul.f32 %v55, %v71
    %v79 = vmul.f32 %v60, %v71
    %v80 = vmul.f32 %v65, %v71
    %81 = vset.pattern.permute.xlu0 1
    %82 = vperm.xlu0 %81, %v19
    %v83 = vpop.permute.xlu0 %82
    %85 = vset.pattern.permute.xlu0 1
    %86 = vperm.xlu0 %85, %v20
    %v87 = vpop.permute.xlu0 %86
    %89 = vset.pattern.permute.xlu0 1
    %90 = vperm.xlu0 %89, %v21
    %v91 = vpop.permute.xlu0 %90
    %93 = vset.pattern.permute.xlu0 1
    %94 = vperm.xlu0 %93, %v22
    %v95 = vpop.permute.xlu0 %94
    %97 = vset.pattern.permute.xlu0 1
    %98 = vperm.xlu0 %97, %v23
    %v99 = vpop.permute.xlu0 %98
    %101 = vset.pattern.permute.xlu0 1
    %102 = vperm.xlu0 %101, %v24
    %v103 = vpop.permute.xlu0 %102
    %105 = vset.pattern.permute.xlu0 1
    %106 = vperm.xlu0 %105, %v25
    %v107 = vpop.permute.xlu0 %106
    %109 = vset.pattern.permute.xlu0 1
    %110 = vperm.xlu0 %109, %v26
    %v111 = vpop.permute.xlu0 %110
    %v113 = vadd.f32 %v73, %v83
    %v114 = vadd.f32 %v74, %v87
    %v115 = vadd.f32 %v75, %v91
    %v116 = vadd.f32 %v76, %v95
    %v117 = vadd.f32 %v77, %v99
    %v118 = vadd.f32 %v78, %v103
    %v119 = vadd.f32 %v79, %v107
    %v120 = vadd.f32 %v80, %v111
    %v121 = vand.u32 2147483647, %v113
    %vm122 = vcmp.le.f32.partialorder %v121, 0.7853982
    %vm123 = vcmp.lt.s32.totalorder %v113, 0
    %v124 = vand.u32 %v113, 2139095040
    %v125 = vshrl.u32 %v124, 23
    %v126 = vsub.s32 %v125, 127
    %v127 = vand.u32 2147483647, %v113
    %v128 = vand.u32 %v127, 8388607
    %v129 = vor.u32 %v128, 8388608
    %v130 = vsub.s32 0, %v129
    %v131 = vadd.s32 %v126, 1
    %vm132 = vcmp.gt.s32.totalorder %v131, 0
    %v133 = vsel %vm132, %v131, 0
    %v134 = vshrl.u32 %v133, 5
    %v135 = vand.u32 %v133, 31
    %v136 = vsub.s32 32, %v135
    %v137 = vshrl.u32 683565275, %v136
    %v138 = vshll.u32 683565275, %v135
    %v139 = vshrl.u32 2475754826, %v136
    %v140 = vor.u32 %v138, %v139
    %v141 = vshll.u32 2475754826, %v135
    %v142 = vshrl.u32 2131351028, %v136
    %v143 = vor.u32 %v141, %v142
    %v144 = vshll.u32 2131351028, %v135
    %v145 = vshrl.u32 2102212464, %v136
    %v146 = vor.u32 %v144, %v145
    %v147 = vshll.u32 2102212464, %v135
    %v148 = vshrl.u32 920167782, %v136
    %v149 = vor.u32 %v147, %v148
    %v150 = vshll.u32 920167782, %v135
    %v151 = vshrl.u32 1326507024, %v136
    %v152 = vor.u32 %v150, %v151
    %vm153 = vcmp.lt.s32.totalorder %v134, 1
    %vm154 = vcmp.lt.s32.totalorder %v134, 2
    %vm155 = vcmp.lt.s32.totalorder %v134, 3
    %vm156 = vcmp.lt.s32.totalorder %v134, 4
    %v157 = vsel %vm153, %v137, %v140
    %v158 = vsel %vm156, %v146, 2102212464
    %v159 = vsel %vm155, %v143, %v158
    %v160 = vsel %vm154, %v157, %v159
    %v161 = vsel %vm153, %v140, %v143
    %v162 = vsel %vm156, %v149, 920167782
    %v163 = vsel %vm155, %v146, %v162
    %v164 = vsel %vm154, %v161, %v163
    %v165 = vsel %vm153, %v143, %v146
    %v166 = vsel %vm156, %v152, 1326507024
    %v167 = vsel %vm155, %v149, %v166
    %v168 = vsel %vm154, %v165, %v167
    %v169 = vshll.u32 %v129, 8
    %v170 = vmul.u32.u64.compose %v169, %v168
    %v171 = vextract.low.u32 %v170
    %v172 = vextract.high.u32 %v170
    %v173 = vmul.u32.u64.compose %v169, %v164
    %v174 = vextract.low.u32 %v173
    %v175 = vextract.high.u32 %v173
    %v176 = vmul.u32 %v169, %v160
    %v177 = vadd.s32 %v172, %v174
    %vm178 = vc.u32 %v172, %v174
    %v179 = vadd.s32 %v175, 1
    %v180 = vsel %vm178, %v179, %v175
    %v181 = vadd.s32 %v176, %v180
    %v182 = vadd.s32 %v181, 536870912
    %v183 = vshrl.u32 %v182, 30
    %v184 = vshll.u32 %v183, 30
    %v185 = vsub.s32 %v181, %v184
    %vm186 = vcmp.lt.s32.totalorder %v185, 0
    %v187 = vsub.s32 0, %v185
    %v188 = vsel %vm186, %v187, %v185
    %v189 = vclz %v188
    %v190 = vsub.s32 %v189, 2
    %vm191 = vcmp.gt.s32.totalorder 0, %v190
    %v192 = vsel %vm191, 0, %v190
    %v193 = vsub.s32 32, %v192
    %v194 = vshll.u32 %v185, %v192
    %v195 = vshrl.u32 %v177, %v193
    %v196 = vor.u32 %v194, %v195
    %v197 = vsub.s32 4294967266, %v192
    %v198 = vadd.s32 %v197, 127
    %v199 = vshll.u32 %v198, 23
    %v200 = vor.u32 4788187, %v199
    %v201 = vand.u32 2147483647, %v200
    %v203 = vcvt.s32.f32 %v196
    %v204 = vmul.f32 %v203, %v201
    %v205 = vxor.u32 %v204, 2147483648
    %v206 = vsel %vm123, %v205, %v204
    %v207 = vsub.s32 4, %v183
    %v208 = vsel %vm123, %v207, %v183
    %v209 = vsel %vm122, %v113, %v206
    %v210 = vsel %vm122, 0, %v208
    %v211 = vcosq.f32.pop %v209
    %v212 = vsinq.f32.pop %v209
    %vm213 = vweird.f32 %v113
    %v214 = vadd.s32 %v210, 3
    %v215 = vand.u32 %v214, 3
    %vm216 = vcmp.lt.s32.totalorder %v215, 2
    %vm217 = vcmp.eq.s32.totalorder %v215, 0
    %v218 = vxor.u32 %v212, 2147483648
    %v219 = vsel %vm217, %v211, %v218
    %vm220 = vcmp.eq.s32.totalorder %v215, 2
    %v221 = vxor.u32 %v211, 2147483648
    %v222 = vsel %vm220, %v221, %v212
    %v223 = vsel %vm216, %v219, %v222
    %v224 = vsel %vm213, nan, %v223
    %v225 = vand.u32 2147483647, %v114
    %vm226 = vcmp.le.f32.partialorder %v225, 0.7853982
    %vm227 = vcmp.lt.s32.totalorder %v114, 0
    %v228 = vand.u32 %v114, 2139095040
    %v229 = vshrl.u32 %v228, 23
    %v230 = vsub.s32 %v229, 127
    %v231 = vand.u32 2147483647, %v114
    %v232 = vand.u32 %v231, 8388607
    %v233 = vor.u32 %v232, 8388608
    %v234 = vsub.s32 0, %v233
    %v235 = vadd.s32 %v230, 1
    %vm236 = vcmp.gt.s32.totalorder %v235, 0
    %v237 = vsel %vm236, %v235, 0
    %v238 = vshrl.u32 %v237, 5
    %v239 = vand.u32 %v237, 31
    %v240 = vsub.s32 32, %v239
    %v241 = vshrl.u32 683565275, %v240
    %v242 = vshll.u32 683565275, %v239
    %v243 = vshrl.u32 2475754826, %v240
    %v244 = vor.u32 %v242, %v243
    %v245 = vshll.u32 2475754826, %v239
    %v246 = vshrl.u32 2131351028, %v240
    %v247 = vor.u32 %v245, %v246
    %v248 = vshll.u32 2131351028, %v239
    %v249 = vshrl.u32 2102212464, %v240
    %v250 = vor.u32 %v248, %v249
    %v251 = vshll.u32 2102212464, %v239
    %v252 = vshrl.u32 920167782, %v240
    %v253 = vor.u32 %v251, %v252
    %v254 = vshll.u32 920167782, %v239
    %v255 = vshrl.u32 1326507024, %v240
    %v256 = vor.u32 %v254, %v255
    %vm257 = vcmp.lt.s32.totalorder %v238, 1
    %vm258 = vcmp.lt.s32.totalorder %v238, 2
    %vm259 = vcmp.lt.s32.totalorder %v238, 3
    %vm260 = vcmp.lt.s32.totalorder %v238, 4
    %v261 = vsel %vm257, %v241, %v244
    %v262 = vsel %vm260, %v250, 2102212464
    %v263 = vsel %vm259, %v247, %v262
    %v264 = vsel %vm258, %v261, %v263
    %v265 = vsel %vm257, %v244, %v247
    %v266 = vsel %vm260, %v253, 920167782
    %v267 = vsel %vm259, %v250, %v266
    %v268 = vsel %vm258, %v265, %v267
    %v269 = vsel %vm257, %v247, %v250
    %v270 = vsel %vm260, %v256, 1326507024
    %v271 = vsel %vm259, %v253, %v270
    %v272 = vsel %vm258, %v269, %v271
    %v273 = vshll.u32 %v233, 8
    %v274 = vmul.u32.u64.compose %v273, %v272
    %v275 = vextract.low.u32 %v274
    %v276 = vextract.high.u32 %v274
    %v277 = vmul.u32.u64.compose %v273, %v268
    %v278 = vextract.low.u32 %v277
    %v279 = vextract.high.u32 %v277
    %v280 = vmul.u32 %v273, %v264
    %v281 = vadd.s32 %v276, %v278
    %vm282 = vc.u32 %v276, %v278
    %v283 = vadd.s32 %v279, 1
    %v284 = vsel %vm282, %v283, %v279
    %v285 = vadd.s32 %v280, %v284
    %v286 = vadd.s32 %v285, 536870912
    %v287 = vshrl.u32 %v286, 30
    %v288 = vshll.u32 %v287, 30
    %v289 = vsub.s32 %v285, %v288
    %vm290 = vcmp.lt.s32.totalorder %v289, 0
    %v291 = vsub.s32 0, %v289
    %v292 = vsel %vm290, %v291, %v289
    %v293 = vclz %v292
    %v294 = vsub.s32 %v293, 2
    %vm295 = vcmp.gt.s32.totalorder 0, %v294
    %v296 = vsel %vm295, 0, %v294
    %v297 = vsub.s32 32, %v296
    %v298 = vshll.u32 %v289, %v296
    %v299 = vshrl.u32 %v281, %v297
    %v300 = vor.u32 %v298, %v299
    %v301 = vsub.s32 4294967266, %v296
    %v302 = vadd.s32 %v301, 127
    %v303 = vshll.u32 %v302, 23
    %v304 = vor.u32 4788187, %v303
    %v305 = vand.u32 2147483647, %v304
    %v307 = vcvt.s32.f32 %v300
    %v308 = vmul.f32 %v307, %v305
    %v309 = vxor.u32 %v308, 2147483648
    %v310 = vsel %vm227, %v309, %v308
    %v311 = vsub.s32 4, %v287
    %v312 = vsel %vm227, %v311, %v287
    %v313 = vsel %vm226, %v114, %v310
    %v314 = vsel %vm226, 0, %v312
    %v315 = vcosq.f32.pop %v313
    %v316 = vsinq.f32.pop %v313
    %vm317 = vweird.f32 %v114
    %v318 = vadd.s32 %v314, 3
    %v319 = vand.u32 %v318, 3
    %vm320 = vcmp.lt.s32.totalorder %v319, 2
    %vm321 = vcmp.eq.s32.totalorder %v319, 0
    %v322 = vxor.u32 %v316, 2147483648
    %v323 = vsel %vm321, %v315, %v322
    %vm324 = vcmp.eq.s32.totalorder %v319, 2
    %v325 = vxor.u32 %v315, 2147483648
    %v326 = vsel %vm324, %v325, %v316
    %v327 = vsel %vm320, %v323, %v326
    %v328 = vsel %vm317, nan, %v327
    %v329 = vand.u32 2147483647, %v115
    %vm330 = vcmp.le.f32.partialorder %v329, 0.7853982
    %vm331 = vcmp.lt.s32.totalorder %v115, 0
    %v332 = vand.u32 %v115, 2139095040
    %v333 = vshrl.u32 %v332, 23
    %v334 = vsub.s32 %v333, 127
    %v335 = vand.u32 2147483647, %v115
    %v336 = vand.u32 %v335, 8388607
    %v337 = vor.u32 %v336, 8388608
    %v338 = vsub.s32 0, %v337
    %v339 = vadd.s32 %v334, 1
    %vm340 = vcmp.gt.s32.totalorder %v339, 0
    %v341 = vsel %vm340, %v339, 0
    %v342 = vshrl.u32 %v341, 5
    %v343 = vand.u32 %v341, 31
    %v344 = vsub.s32 32, %v343
    %v345 = vshrl.u32 683565275, %v344
    %v346 = vshll.u32 683565275, %v343
    %v347 = vshrl.u32 2475754826, %v344
    %v348 = vor.u32 %v346, %v347
    %v349 = vshll.u32 2475754826, %v343
    %v350 = vshrl.u32 2131351028, %v344
    %v351 = vor.u32 %v349, %v350
    %v352 = vshll.u32 2131351028, %v343
    %v353 = vshrl.u32 2102212464, %v344
    %v354 = vor.u32 %v352, %v353
    %v355 = vshll.u32 2102212464, %v343
    %v356 = vshrl.u32 920167782, %v344
    %v357 = vor.u32 %v355, %v356
    %v358 = vshll.u32 920167782, %v343
    %v359 = vshrl.u32 1326507024, %v344
    %v360 = vor.u32 %v358, %v359
    %vm361 = vcmp.lt.s32.totalorder %v342, 1
    %vm362 = vcmp.lt.s32.totalorder %v342, 2
    %vm363 = vcmp.lt.s32.totalorder %v342, 3
    %vm364 = vcmp.lt.s32.totalorder %v342, 4
    %v365 = vsel %vm361, %v345, %v348
    %v366 = vsel %vm364, %v354, 2102212464
    %v367 = vsel %vm363, %v351, %v366
    %v368 = vsel %vm362, %v365, %v367
    %v369 = vsel %vm361, %v348, %v351
    %v370 = vsel %vm364, %v357, 920167782
    %v371 = vsel %vm363, %v354, %v370
    %v372 = vsel %vm362, %v369, %v371
    %v373 = vsel %vm361, %v351, %v354
    %v374 = vsel %vm364, %v360, 1326507024
    %v375 = vsel %vm363, %v357, %v374
    %v376 = vsel %vm362, %v373, %v375
    %v377 = vshll.u32 %v337, 8
    %v378 = vmul.u32.u64.compose %v377, %v376
    %v379 = vextract.low.u32 %v378
    %v380 = vextract.high.u32 %v378
    %v381 = vmul.u32.u64.compose %v377, %v372
    %v382 = vextract.low.u32 %v381
    %v383 = vextract.high.u32 %v381
    %v384 = vmul.u32 %v377, %v368
    %v385 = vadd.s32 %v380, %v382
    %vm386 = vc.u32 %v380, %v382
    %v387 = vadd.s32 %v383, 1
    %v388 = vsel %vm386, %v387, %v383
    %v389 = vadd.s32 %v384, %v388
    %v390 = vadd.s32 %v389, 536870912
    %v391 = vshrl.u32 %v390, 30
    %v392 = vshll.u32 %v391, 30
    %v393 = vsub.s32 %v389, %v392
    %vm394 = vcmp.lt.s32.totalorder %v393, 0
    %v395 = vsub.s32 0, %v393
    %v396 = vsel %vm394, %v395, %v393
    %v397 = vclz %v396
    %v398 = vsub.s32 %v397, 2
    %vm399 = vcmp.gt.s32.totalorder 0, %v398
    %v400 = vsel %vm399, 0, %v398
    %v401 = vsub.s32 32, %v400
    %v402 = vshll.u32 %v393, %v400
    %v403 = vshrl.u32 %v385, %v401
    %v404 = vor.u32 %v402, %v403
    %v405 = vsub.s32 4294967266, %v400
    %v406 = vadd.s32 %v405, 127
    %v407 = vshll.u32 %v406, 23
    %v408 = vor.u32 4788187, %v407
    %v409 = vand.u32 2147483647, %v408
    %v411 = vcvt.s32.f32 %v404
    %v412 = vmul.f32 %v411, %v409
    %v413 = vxor.u32 %v412, 2147483648
    %v414 = vsel %vm331, %v413, %v412
    %v415 = vsub.s32 4, %v391
    %v416 = vsel %vm331, %v415, %v391
    %v417 = vsel %vm330, %v115, %v414
    %v418 = vsel %vm330, 0, %v416
    %v419 = vcosq.f32.pop %v417
    %v420 = vsinq.f32.pop %v417
    %vm421 = vweird.f32 %v115
    %v422 = vadd.s32 %v418, 3
    %v423 = vand.u32 %v422, 3
    %vm424 = vcmp.lt.s32.totalorder %v423, 2
    %vm425 = vcmp.eq.s32.totalorder %v423, 0
    %v426 = vxor.u32 %v420, 2147483648
    %v427 = vsel %vm425, %v419, %v426
    %vm428 = vcmp.eq.s32.totalorder %v423, 2
    %v429 = vxor.u32 %v419, 2147483648
    %v430 = vsel %vm428, %v429, %v420
    %v431 = vsel %vm424, %v427, %v430
    %v432 = vsel %vm421, nan, %v431
    %v433 = vand.u32 2147483647, %v116
    %vm434 = vcmp.le.f32.partialorder %v433, 0.7853982
    %vm435 = vcmp.lt.s32.totalorder %v116, 0
    %v436 = vand.u32 %v116, 2139095040
    %v437 = vshrl.u32 %v436, 23
    %v438 = vsub.s32 %v437, 127
    %v439 = vand.u32 2147483647, %v116
    %v440 = vand.u32 %v439, 8388607
    %v441 = vor.u32 %v440, 8388608
    %v442 = vsub.s32 0, %v441
    %v443 = vadd.s32 %v438, 1
    %vm444 = vcmp.gt.s32.totalorder %v443, 0
    %v445 = vsel %vm444, %v443, 0
    %v446 = vshrl.u32 %v445, 5
    %v447 = vand.u32 %v445, 31
    %v448 = vsub.s32 32, %v447
    %v449 = vshrl.u32 683565275, %v448
    %v450 = vshll.u32 683565275, %v447
    %v451 = vshrl.u32 2475754826, %v448
    %v452 = vor.u32 %v450, %v451
    %v453 = vshll.u32 2475754826, %v447
    %v454 = vshrl.u32 2131351028, %v448
    %v455 = vor.u32 %v453, %v454
    %v456 = vshll.u32 2131351028, %v447
    %v457 = vshrl.u32 2102212464, %v448
    %v458 = vor.u32 %v456, %v457
    %v459 = vshll.u32 2102212464, %v447
    %v460 = vshrl.u32 920167782, %v448
    %v461 = vor.u32 %v459, %v460
    %v462 = vshll.u32 920167782, %v447
    %v463 = vshrl.u32 1326507024, %v448
    %v464 = vor.u32 %v462, %v463
    %vm465 = vcmp.lt.s32.totalorder %v446, 1
    %vm466 = vcmp.lt.s32.totalorder %v446, 2
    %vm467 = vcmp.lt.s32.totalorder %v446, 3
    %vm468 = vcmp.lt.s32.totalorder %v446, 4
    %v469 = vsel %vm465, %v449, %v452
    %v470 = vsel %vm468, %v458, 2102212464
    %v471 = vsel %vm467, %v455, %v470
    %v472 = vsel %vm466, %v469, %v471
    %v473 = vsel %vm465, %v452, %v455
    %v474 = vsel %vm468, %v461, 920167782
    %v475 = vsel %vm467, %v458, %v474
    %v476 = vsel %vm466, %v473, %v475
    %v477 = vsel %vm465, %v455, %v458
    %v478 = vsel %vm468, %v464, 1326507024
    %v479 = vsel %vm467, %v461, %v478
    %v480 = vsel %vm466, %v477, %v479
    %v481 = vshll.u32 %v441, 8
    %v482 = vmul.u32.u64.compose %v481, %v480
    %v483 = vextract.low.u32 %v482
    %v484 = vextract.high.u32 %v482
    %v485 = vmul.u32.u64.compose %v481, %v476
    %v486 = vextract.low.u32 %v485
    %v487 = vextract.high.u32 %v485
    %v488 = vmul.u32 %v481, %v472
    %v489 = vadd.s32 %v484, %v486
    %vm490 = vc.u32 %v484, %v486
    %v491 = vadd.s32 %v487, 1
    %v492 = vsel %vm490, %v491, %v487
    %v493 = vadd.s32 %v488, %v492
    %v494 = vadd.s32 %v493, 536870912
    %v495 = vshrl.u32 %v494, 30
    %v496 = vshll.u32 %v495, 30
    %v497 = vsub.s32 %v493, %v496
    %vm498 = vcmp.lt.s32.totalorder %v497, 0
    %v499 = vsub.s32 0, %v497
    %v500 = vsel %vm498, %v499, %v497
    %v501 = vclz %v500
    %v502 = vsub.s32 %v501, 2
    %vm503 = vcmp.gt.s32.totalorder 0, %v502
    %v504 = vsel %vm503, 0, %v502
    %v505 = vsub.s32 32, %v504
    %v506 = vshll.u32 %v497, %v504
    %v507 = vshrl.u32 %v489, %v505
    %v508 = vor.u32 %v506, %v507
    %v509 = vsub.s32 4294967266, %v504
    %v510 = vadd.s32 %v509, 127
    %v511 = vshll.u32 %v510, 23
    %v512 = vor.u32 4788187, %v511
    %v513 = vand.u32 2147483647, %v512
    %v515 = vcvt.s32.f32 %v508
    %v516 = vmul.f32 %v515, %v513
    %v517 = vxor.u32 %v516, 2147483648
    %v518 = vsel %vm435, %v517, %v516
    %v519 = vsub.s32 4, %v495
    %v520 = vsel %vm435, %v519, %v495
    %v521 = vsel %vm434, %v116, %v518
    %v522 = vsel %vm434, 0, %v520
    %v523 = vcosq.f32.pop %v521
    %v524 = vsinq.f32.pop %v521
    %vm525 = vweird.f32 %v116
    %v526 = vadd.s32 %v522, 3
    %v527 = vand.u32 %v526, 3
    %vm528 = vcmp.lt.s32.totalorder %v527, 2
    %vm529 = vcmp.eq.s32.totalorder %v527, 0
    %v530 = vxor.u32 %v524, 2147483648
    %v531 = vsel %vm529, %v523, %v530
    %vm532 = vcmp.eq.s32.totalorder %v527, 2
    %v533 = vxor.u32 %v523, 2147483648
    %v534 = vsel %vm532, %v533, %v524
    %v535 = vsel %vm528, %v531, %v534
    %v536 = vsel %vm525, nan, %v535
    %v537 = vand.u32 2147483647, %v117
    %vm538 = vcmp.le.f32.partialorder %v537, 0.7853982
    %vm539 = vcmp.lt.s32.totalorder %v117, 0
    %v540 = vand.u32 %v117, 2139095040
    %v541 = vshrl.u32 %v540, 23
    %v542 = vsub.s32 %v541, 127
    %v543 = vand.u32 2147483647, %v117
    %v544 = vand.u32 %v543, 8388607
    %v545 = vor.u32 %v544, 8388608
    %v546 = vsub.s32 0, %v545
    %v547 = vadd.s32 %v542, 1
    %vm548 = vcmp.gt.s32.totalorder %v547, 0
    %v549 = vsel %vm548, %v547, 0
    %v550 = vshrl.u32 %v549, 5
    %v551 = vand.u32 %v549, 31
    %v552 = vsub.s32 32, %v551
    %v553 = vshrl.u32 683565275, %v552
    %v554 = vshll.u32 683565275, %v551
    %v555 = vshrl.u32 2475754826, %v552
    %v556 = vor.u32 %v554, %v555
    %v557 = vshll.u32 2475754826, %v551
    %v558 = vshrl.u32 2131351028, %v552
    %v559 = vor.u32 %v557, %v558
    %v560 = vshll.u32 2131351028, %v551
    %v561 = vshrl.u32 2102212464, %v552
    %v562 = vor.u32 %v560, %v561
    %v563 = vshll.u32 2102212464, %v551
    %v564 = vshrl.u32 920167782, %v552
    %v565 = vor.u32 %v563, %v564
    %v566 = vshll.u32 920167782, %v551
    %v567 = vshrl.u32 1326507024, %v552
    %v568 = vor.u32 %v566, %v567
    %vm569 = vcmp.lt.s32.totalorder %v550, 1
    %vm570 = vcmp.lt.s32.totalorder %v550, 2
    %vm571 = vcmp.lt.s32.totalorder %v550, 3
    %vm572 = vcmp.lt.s32.totalorder %v550, 4
    %v573 = vsel %vm569, %v553, %v556
    %v574 = vsel %vm572, %v562, 2102212464
    %v575 = vsel %vm571, %v559, %v574
    %v576 = vsel %vm570, %v573, %v575
    %v577 = vsel %vm569, %v556, %v559
    %v578 = vsel %vm572, %v565, 920167782
    %v579 = vsel %vm571, %v562, %v578
    %v580 = vsel %vm570, %v577, %v579
    %v581 = vsel %vm569, %v559, %v562
    %v582 = vsel %vm572, %v568, 1326507024
    %v583 = vsel %vm571, %v565, %v582
    %v584 = vsel %vm570, %v581, %v583
    %v585 = vshll.u32 %v545, 8
    %v586 = vmul.u32.u64.compose %v585, %v584
    %v587 = vextract.low.u32 %v586
    %v588 = vextract.high.u32 %v586
    %v589 = vmul.u32.u64.compose %v585, %v580
    %v590 = vextract.low.u32 %v589
    %v591 = vextract.high.u32 %v589
    %v592 = vmul.u32 %v585, %v576
    %v593 = vadd.s32 %v588, %v590
    %vm594 = vc.u32 %v588, %v590
    %v595 = vadd.s32 %v591, 1
    %v596 = vsel %vm594, %v595, %v591
    %v597 = vadd.s32 %v592, %v596
    %v598 = vadd.s32 %v597, 536870912
    %v599 = vshrl.u32 %v598, 30
    %v600 = vshll.u32 %v599, 30
    %v601 = vsub.s32 %v597, %v600
    %vm602 = vcmp.lt.s32.totalorder %v601, 0
    %v603 = vsub.s32 0, %v601
    %v604 = vsel %vm602, %v603, %v601
    %v605 = vclz %v604
    %v606 = vsub.s32 %v605, 2
    %vm607 = vcmp.gt.s32.totalorder 0, %v606
    %v608 = vsel %vm607, 0, %v606
    %v609 = vsub.s32 32, %v608
    %v610 = vshll.u32 %v601, %v608
    %v611 = vshrl.u32 %v593, %v609
    %v612 = vor.u32 %v610, %v611
    %v613 = vsub.s32 4294967266, %v608
    %v614 = vadd.s32 %v613, 127
    %v615 = vshll.u32 %v614, 23
    %v616 = vor.u32 4788187, %v615
    %v617 = vand.u32 2147483647, %v616
    %v619 = vcvt.s32.f32 %v612
    %v620 = vmul.f32 %v619, %v617
    %v621 = vxor.u32 %v620, 2147483648
    %v622 = vsel %vm539, %v621, %v620
    %v623 = vsub.s32 4, %v599
    %v624 = vsel %vm539, %v623, %v599
    %v625 = vsel %vm538, %v117, %v622
    %v626 = vsel %vm538, 0, %v624
    %v627 = vcosq.f32.pop %v625
    %v628 = vsinq.f32.pop %v625
    %vm629 = vweird.f32 %v117
    %v630 = vadd.s32 %v626, 3
    %v631 = vand.u32 %v630, 3
    %vm632 = vcmp.lt.s32.totalorder %v631, 2
    %vm633 = vcmp.eq.s32.totalorder %v631, 0
    %v634 = vxor.u32 %v628, 2147483648
    %v635 = vsel %vm633, %v627, %v634
    %vm636 = vcmp.eq.s32.totalorder %v631, 2
    %v637 = vxor.u32 %v627, 2147483648
    %v638 = vsel %vm636, %v637, %v628
    %v639 = vsel %vm632, %v635, %v638
    %v640 = vsel %vm629, nan, %v639
    %v641 = vand.u32 2147483647, %v118
    %vm642 = vcmp.le.f32.partialorder %v641, 0.7853982
    %vm643 = vcmp.lt.s32.totalorder %v118, 0
    %v644 = vand.u32 %v118, 2139095040
    %v645 = vshrl.u32 %v644, 23
    %v646 = vsub.s32 %v645, 127
    %v647 = vand.u32 2147483647, %v118
    %v648 = vand.u32 %v647, 8388607
    %v649 = vor.u32 %v648, 8388608
    %v650 = vsub.s32 0, %v649
    %v651 = vadd.s32 %v646, 1
    %vm652 = vcmp.gt.s32.totalorder %v651, 0
    %v653 = vsel %vm652, %v651, 0
    %v654 = vshrl.u32 %v653, 5
    %v655 = vand.u32 %v653, 31
    %v656 = vsub.s32 32, %v655
    %v657 = vshrl.u32 683565275, %v656
    %v658 = vshll.u32 683565275, %v655
    %v659 = vshrl.u32 2475754826, %v656
    %v660 = vor.u32 %v658, %v659
    %v661 = vshll.u32 2475754826, %v655
    %v662 = vshrl.u32 2131351028, %v656
    %v663 = vor.u32 %v661, %v662
    %v664 = vshll.u32 2131351028, %v655
    %v665 = vshrl.u32 2102212464, %v656
    %v666 = vor.u32 %v664, %v665
    %v667 = vshll.u32 2102212464, %v655
    %v668 = vshrl.u32 920167782, %v656
    %v669 = vor.u32 %v667, %v668
    %v670 = vshll.u32 920167782, %v655
    %v671 = vshrl.u32 1326507024, %v656
    %v672 = vor.u32 %v670, %v671
    %vm673 = vcmp.lt.s32.totalorder %v654, 1
    %vm674 = vcmp.lt.s32.totalorder %v654, 2
    %vm675 = vcmp.lt.s32.totalorder %v654, 3
    %vm676 = vcmp.lt.s32.totalorder %v654, 4
    %v677 = vsel %vm673, %v657, %v660
    %v678 = vsel %vm676, %v666, 2102212464
    %v679 = vsel %vm675, %v663, %v678
    %v680 = vsel %vm674, %v677, %v679
    %v681 = vsel %vm673, %v660, %v663
    %v682 = vsel %vm676, %v669, 920167782
    %v683 = vsel %vm675, %v666, %v682
    %v684 = vsel %vm674, %v681, %v683
    %v685 = vsel %vm673, %v663, %v666
    %v686 = vsel %vm676, %v672, 1326507024
    %v687 = vsel %vm675, %v669, %v686
    %v688 = vsel %vm674, %v685, %v687
    %v689 = vshll.u32 %v649, 8
    %v690 = vmul.u32.u64.compose %v689, %v688
    %v691 = vextract.low.u32 %v690
    %v692 = vextract.high.u32 %v690
    %v693 = vmul.u32.u64.compose %v689, %v684
    %v694 = vextract.low.u32 %v693
    %v695 = vextract.high.u32 %v693
    %v696 = vmul.u32 %v689, %v680
    %v697 = vadd.s32 %v692, %v694
    %vm698 = vc.u32 %v692, %v694
    %v699 = vadd.s32 %v695, 1
    %v700 = vsel %vm698, %v699, %v695
    %v701 = vadd.s32 %v696, %v700
    %v702 = vadd.s32 %v701, 536870912
    %v703 = vshrl.u32 %v702, 30
    %v704 = vshll.u32 %v703, 30
    %v705 = vsub.s32 %v701, %v704
    %vm706 = vcmp.lt.s32.totalorder %v705, 0
    %v707 = vsub.s32 0, %v705
    %v708 = vsel %vm706, %v707, %v705
    %v709 = vclz %v708
    %v710 = vsub.s32 %v709, 2
    %vm711 = vcmp.gt.s32.totalorder 0, %v710
    %v712 = vsel %vm711, 0, %v710
    %v713 = vsub.s32 32, %v712
    %v714 = vshll.u32 %v705, %v712
    %v715 = vshrl.u32 %v697, %v713
    %v716 = vor.u32 %v714, %v715
    %v717 = vsub.s32 4294967266, %v712
    %v718 = vadd.s32 %v717, 127
    %v719 = vshll.u32 %v718, 23
    %v720 = vor.u32 4788187, %v719
    %v721 = vand.u32 2147483647, %v720
    %v723 = vcvt.s32.f32 %v716
    %v724 = vmul.f32 %v723, %v721
    %v725 = vxor.u32 %v724, 2147483648
    %v726 = vsel %vm643, %v725, %v724
    %v727 = vsub.s32 4, %v703
    %v728 = vsel %vm643, %v727, %v703
    %v729 = vsel %vm642, %v118, %v726
    %v730 = vsel %vm642, 0, %v728
    %v731 = vcosq.f32.pop %v729
    %v732 = vsinq.f32.pop %v729
    %vm733 = vweird.f32 %v118
    %v734 = vadd.s32 %v730, 3
    %v735 = vand.u32 %v734, 3
    %vm736 = vcmp.lt.s32.totalorder %v735, 2
    %vm737 = vcmp.eq.s32.totalorder %v735, 0
    %v738 = vxor.u32 %v732, 2147483648
    %v739 = vsel %vm737, %v731, %v738
    %vm740 = vcmp.eq.s32.totalorder %v735, 2
    %v741 = vxor.u32 %v731, 2147483648
    %v742 = vsel %vm740, %v741, %v732
    %v743 = vsel %vm736, %v739, %v742
    %v744 = vsel %vm733, nan, %v743
    %v745 = vand.u32 2147483647, %v119
    %vm746 = vcmp.le.f32.partialorder %v745, 0.7853982
    %vm747 = vcmp.lt.s32.totalorder %v119, 0
    %v748 = vand.u32 %v119, 2139095040
    %v749 = vshrl.u32 %v748, 23
    %v750 = vsub.s32 %v749, 127
    %v751 = vand.u32 2147483647, %v119
    %v752 = vand.u32 %v751, 8388607
    %v753 = vor.u32 %v752, 8388608
    %v754 = vsub.s32 0, %v753
    %v755 = vadd.s32 %v750, 1
    %vm756 = vcmp.gt.s32.totalorder %v755, 0
    %v757 = vsel %vm756, %v755, 0
    %v758 = vshrl.u32 %v757, 5
    %v759 = vand.u32 %v757, 31
    %v760 = vsub.s32 32, %v759
    %v761 = vshrl.u32 683565275, %v760
    %v762 = vshll.u32 683565275, %v759
    %v763 = vshrl.u32 2475754826, %v760
    %v764 = vor.u32 %v762, %v763
    %v765 = vshll.u32 2475754826, %v759
    %v766 = vshrl.u32 2131351028, %v760
    %v767 = vor.u32 %v765, %v766
    %v768 = vshll.u32 2131351028, %v759
    %v769 = vshrl.u32 2102212464, %v760
    %v770 = vor.u32 %v768, %v769
    %v771 = vshll.u32 2102212464, %v759
    %v772 = vshrl.u32 920167782, %v760
    %v773 = vor.u32 %v771, %v772
    %v774 = vshll.u32 920167782, %v759
    %v775 = vshrl.u32 1326507024, %v760
    %v776 = vor.u32 %v774, %v775
    %vm777 = vcmp.lt.s32.totalorder %v758, 1
    %vm778 = vcmp.lt.s32.totalorder %v758, 2
    %vm779 = vcmp.lt.s32.totalorder %v758, 3
    %vm780 = vcmp.lt.s32.totalorder %v758, 4
    %v781 = vsel %vm777, %v761, %v764
    %v782 = vsel %vm780, %v770, 2102212464
    %v783 = vsel %vm779, %v767, %v782
    %v784 = vsel %vm778, %v781, %v783
    %v785 = vsel %vm777, %v764, %v767
    %v786 = vsel %vm780, %v773, 920167782
    %v787 = vsel %vm779, %v770, %v786
    %v788 = vsel %vm778, %v785, %v787
    %v789 = vsel %vm777, %v767, %v770
    %v790 = vsel %vm780, %v776, 1326507024
    %v791 = vsel %vm779, %v773, %v790
    %v792 = vsel %vm778, %v789, %v791
    %v793 = vshll.u32 %v753, 8
    %v794 = vmul.u32.u64.compose %v793, %v792
    %v795 = vextract.low.u32 %v794
    %v796 = vextract.high.u32 %v794
    %v797 = vmul.u32.u64.compose %v793, %v788
    %v798 = vextract.low.u32 %v797
    %v799 = vextract.high.u32 %v797
    %v800 = vmul.u32 %v793, %v784
    %v801 = vadd.s32 %v796, %v798
    %vm802 = vc.u32 %v796, %v798
    %v803 = vadd.s32 %v799, 1
    %v804 = vsel %vm802, %v803, %v799
    %v805 = vadd.s32 %v800, %v804
    %v806 = vadd.s32 %v805, 536870912
    %v807 = vshrl.u32 %v806, 30
    %v808 = vshll.u32 %v807, 30
    %v809 = vsub.s32 %v805, %v808
    %vm810 = vcmp.lt.s32.totalorder %v809, 0
    %v811 = vsub.s32 0, %v809
    %v812 = vsel %vm810, %v811, %v809
    %v813 = vclz %v812
    %v814 = vsub.s32 %v813, 2
    %vm815 = vcmp.gt.s32.totalorder 0, %v814
    %v816 = vsel %vm815, 0, %v814
    %v817 = vsub.s32 32, %v816
    %v818 = vshll.u32 %v809, %v816
    %v819 = vshrl.u32 %v801, %v817
    %v820 = vor.u32 %v818, %v819
    %v821 = vsub.s32 4294967266, %v816
    %v822 = vadd.s32 %v821, 127
    %v823 = vshll.u32 %v822, 23
    %v824 = vor.u32 4788187, %v823
    %v825 = vand.u32 2147483647, %v824
    %v827 = vcvt.s32.f32 %v820
    %v828 = vmul.f32 %v827, %v825
    %v829 = vxor.u32 %v828, 2147483648
    %v830 = vsel %vm747, %v829, %v828
    %v831 = vsub.s32 4, %v807
    %v832 = vsel %vm747, %v831, %v807
    %v833 = vsel %vm746, %v119, %v830
    %v834 = vsel %vm746, 0, %v832
    %v835 = vcosq.f32.pop %v833
    %v836 = vsinq.f32.pop %v833
    %vm837 = vweird.f32 %v119
    %v838 = vadd.s32 %v834, 3
    %v839 = vand.u32 %v838, 3
    %vm840 = vcmp.lt.s32.totalorder %v839, 2
    %vm841 = vcmp.eq.s32.totalorder %v839, 0
    %v842 = vxor.u32 %v836, 2147483648
    %v843 = vsel %vm841, %v835, %v842
    %vm844 = vcmp.eq.s32.totalorder %v839, 2
    %v845 = vxor.u32 %v835, 2147483648
    %v846 = vsel %vm844, %v845, %v836
    %v847 = vsel %vm840, %v843, %v846
    %v848 = vsel %vm837, nan, %v847
    %v849 = vand.u32 2147483647, %v120
    %vm850 = vcmp.le.f32.partialorder %v849, 0.7853982
    %vm851 = vcmp.lt.s32.totalorder %v120, 0
    %v852 = vand.u32 %v120, 2139095040
    %v853 = vshrl.u32 %v852, 23
    %v854 = vsub.s32 %v853, 127
    %v855 = vand.u32 2147483647, %v120
    %v856 = vand.u32 %v855, 8388607
    %v857 = vor.u32 %v856, 8388608
    %v858 = vsub.s32 0, %v857
    %v859 = vadd.s32 %v854, 1
    %vm860 = vcmp.gt.s32.totalorder %v859, 0
    %v861 = vsel %vm860, %v859, 0
    %v862 = vshrl.u32 %v861, 5
    %v863 = vand.u32 %v861, 31
    %v864 = vsub.s32 32, %v863
    %v865 = vshrl.u32 683565275, %v864
    %v866 = vshll.u32 683565275, %v863
    %v867 = vshrl.u32 2475754826, %v864
    %v868 = vor.u32 %v866, %v867
    %v869 = vshll.u32 2475754826, %v863
    %v870 = vshrl.u32 2131351028, %v864
    %v871 = vor.u32 %v869, %v870
    %v872 = vshll.u32 2131351028, %v863
    %v873 = vshrl.u32 2102212464, %v864
    %v874 = vor.u32 %v872, %v873
    %v875 = vshll.u32 2102212464, %v863
    %v876 = vshrl.u32 920167782, %v864
    %v877 = vor.u32 %v875, %v876
    %v878 = vshll.u32 920167782, %v863
    %v879 = vshrl.u32 1326507024, %v864
    %v880 = vor.u32 %v878, %v879
    %vm881 = vcmp.lt.s32.totalorder %v862, 1
    %vm882 = vcmp.lt.s32.totalorder %v862, 2
    %vm883 = vcmp.lt.s32.totalorder %v862, 3
    %vm884 = vcmp.lt.s32.totalorder %v862, 4
    %v885 = vsel %vm881, %v865, %v868
    %v886 = vsel %vm884, %v874, 2102212464
    %v887 = vsel %vm883, %v871, %v886
    %v888 = vsel %vm882, %v885, %v887
    %v889 = vsel %vm881, %v868, %v871
    %v890 = vsel %vm884, %v877, 920167782
    %v891 = vsel %vm883, %v874, %v890
    %v892 = vsel %vm882, %v889, %v891
    %v893 = vsel %vm881, %v871, %v874
    %v894 = vsel %vm884, %v880, 1326507024
    %v895 = vsel %vm883, %v877, %v894
    %v896 = vsel %vm882, %v893, %v895
    %v897 = vshll.u32 %v857, 8
    %v898 = vmul.u32.u64.compose %v897, %v896
    %v899 = vextract.low.u32 %v898
    %v900 = vextract.high.u32 %v898
    %v901 = vmul.u32.u64.compose %v897, %v892
    %v902 = vextract.low.u32 %v901
    %v903 = vextract.high.u32 %v901
    %v904 = vmul.u32 %v897, %v888
    %v905 = vadd.s32 %v900, %v902
    %vm906 = vc.u32 %v900, %v902
    %v907 = vadd.s32 %v903, 1
    %v908 = vsel %vm906, %v907, %v903
    %v909 = vadd.s32 %v904, %v908
    %v910 = vadd.s32 %v909, 536870912
    %v911 = vshrl.u32 %v910, 30
    %v912 = vshll.u32 %v911, 30
    %v913 = vsub.s32 %v909, %v912
    %vm914 = vcmp.lt.s32.totalorder %v913, 0
    %v915 = vsub.s32 0, %v913
    %v916 = vsel %vm914, %v915, %v913
    %v917 = vclz %v916
    %v918 = vsub.s32 %v917, 2
    %vm919 = vcmp.gt.s32.totalorder 0, %v918
    %v920 = vsel %vm919, 0, %v918
    %v921 = vsub.s32 32, %v920
    %v922 = vshll.u32 %v913, %v920
    %v923 = vshrl.u32 %v905, %v921
    %v924 = vor.u32 %v922, %v923
    %v925 = vsub.s32 4294967266, %v920
    %v926 = vadd.s32 %v925, 127
    %v927 = vshll.u32 %v926, 23
    %v928 = vor.u32 4788187, %v927
    %v929 = vand.u32 2147483647, %v928
    %v931 = vcvt.s32.f32 %v924
    %v932 = vmul.f32 %v931, %v929
    %v933 = vxor.u32 %v932, 2147483648
    %v934 = vsel %vm851, %v933, %v932
    %v935 = vsub.s32 4, %v911
    %v936 = vsel %vm851, %v935, %v911
    %v937 = vsel %vm850, %v120, %v934
    %v938 = vsel %vm850, 0, %v936
    %v939 = vcosq.f32.pop %v937
    %v940 = vsinq.f32.pop %v937
    %vm941 = vweird.f32 %v120
    %v942 = vadd.s32 %v938, 3
    %v943 = vand.u32 %v942, 3
    %vm944 = vcmp.lt.s32.totalorder %v943, 2
    %vm945 = vcmp.eq.s32.totalorder %v943, 0
    %v946 = vxor.u32 %v940, 2147483648
    %v947 = vsel %vm945, %v939, %v946
    %vm948 = vcmp.eq.s32.totalorder %v943, 2
    %v949 = vxor.u32 %v939, 2147483648
    %v950 = vsel %vm948, %v949, %v940
    %v951 = vsel %vm944, %v947, %v950
    %v952 = vsel %vm941, nan, %v951
    %v953 = vld [vmem:[%s2] sm:$0xff]
    %v954 = vld [vmem:[%s2 + $0x8] sm:$0xff]
    %v955 = vld [vmem:[%s2 + $0x10] sm:$0xff]
    %v956 = vld [vmem:[%s2 + $0x18] sm:$0xff]
    %v957 = vld [vmem:[%s3] sm:$0xff]
    %v958 = vld [vmem:[%s3 + $0x8] sm:$0xff]
    %v959 = vld [vmem:[%s3 + $0x10] sm:$0xff]
    %v960 = vld [vmem:[%s3 + $0x18] sm:$0xff]
    %962 = vset.pattern.permute.xlu0 0
    %963 = vperm.xlu0 %962, %v957
    %v964 = vpop.permute.xlu0 %963
    %967 = vset.pattern.permute.xlu0 0
    %968 = vperm.xlu0 %967, %v958
    %v969 = vpop.permute.xlu0 %968
    %972 = vset.pattern.permute.xlu0 0
    %973 = vperm.xlu0 %972, %v959
    %v974 = vpop.permute.xlu0 %973
    %977 = vset.pattern.permute.xlu0 0
    %978 = vperm.xlu0 %977, %v960
    %v979 = vpop.permute.xlu0 %978
    %vm981 = vcmask 523264
    %v983 = vsel %vm981, %v953, 0
    %v986 = vsel %vm981, %v954, 0
    %v989 = vsel %vm981, %v955, 0
    %v992 = vsel %vm981, %v956, 0
    %994 = vmatprep.subr.mxu0 0.0
    %995 = vmatpush1.msra.mxu0 %v224
    %996 = vmatprep.subr.mxu0 0.0
    %997 = vmatpush1.msra.mxu0 %v328
    %998 = vmatprep.subr.mxu0 0.0
    %999 = vmatpush1.msra.mxu0 %v432
    %1000 = vmatprep.subr.mxu0 0.0
    %1001 = vmatpush1.msra.mxu0 %v536
    %1002 = vmatprep.subr.mxu0 0.0
    %1003 = vmatpush1.msra.mxu0 %v640
    %1004 = vmatprep.subr.mxu0 0.0
    %1005 = vmatpush1.msra.mxu0 %v744
    %1006 = vmatprep.subr.mxu0 0.0
    %1007 = vmatpush1.msra.mxu0 %v848
    %1008 = vmatprep.subr.mxu0 0.0
    %1009 = vmatpush1.msra.mxu0 %v952
    %1010 = vmatprep.subr.mxu0 0.0
    %1011 = vmatpush1.msra.mxu0 0.0
    %1012 = vmatprep.subr.mxu0 0.0
    %1013 = vmatpush1.msra.mxu0 0.0
    %1014 = vmatprep.subr.mxu0 0.0
    %1015 = vmatpush1.msra.mxu0 0.0
    %1016 = vmatprep.subr.mxu0 0.0
    %1017 = vmatpush1.msra.mxu0 0.0
    %1018 = vmatprep.subr.mxu0 0.0
    %1019 = vmatpush1.msra.mxu0 0.0
    %1020 = vmatprep.subr.mxu0 0.0
    %1021 = vmatpush1.msra.mxu0 0.0
    %1022 = vmatprep.subr.mxu0 0.0
    %1023 = vmatpush1.msra.mxu0 0.0
    %1024 = vmatprep.subr.mxu0 0.0
    %1025 = vmatpush1.msra.mxu0 0.0
    %1026 = vmatprep.subr.mxu0 0.0
    %1027 = vmatpush1.msra.mxu0 0.0
    %1028 = vmatprep.subr.mxu0 0.0
    %1029 = vmatpush1.msra.mxu0 0.0
    %1030 = vmatprep.subr.mxu0 0.0
    %1031 = vmatpush1.msra.mxu0 0.0
    %1032 = vmatprep.subr.mxu0 0.0
    %1033 = vmatpush1.msra.mxu0 0.0
    %1034 = vmatprep.subr.mxu0 0.0
    %1035 = vmatpush1.msra.mxu0 0.0
    %1036 = vmatprep.subr.mxu0 0.0
    %1037 = vmatpush1.msra.mxu0 0.0
    %1038 = vmatprep.subr.mxu0 0.0
    %1039 = vmatpush1.msra.mxu0 0.0
    %1040 = vmatprep.subr.mxu0 0.0
    %1041 = vmatpush1.msra.mxu0 0.0
    %1042 = vmatprep.subr.mxu0 0.0
    %1043 = vmatpush1.msra.mxu0 0.0
    %1044 = vmatprep.subr.mxu0 0.0
    %1045 = vmatpush1.msra.mxu0 0.0
    %1046 = vmatprep.subr.mxu0 0.0
    %1047 = vmatpush1.msra.mxu0 0.0
    %1048 = vmatprep.subr.mxu0 0.0
    %1049 = vmatpush1.msra.mxu0 0.0
    %1050 = vmatprep.subr.mxu0 0.0
    %1051 = vmatpush1.msra.mxu0 0.0
    %1052 = vmatprep.subr.mxu0 0.0
    %1053 = vmatpush1.msra.mxu0 0.0
    %1054 = vmatprep.subr.mxu0 0.0
    %1055 = vmatpush1.msra.mxu0 0.0
    %1056 = vmatprep.subr.mxu0 0.0
    %1057 = vmatpush1.msra.mxu0 0.0
    %1058 = vmatprep.mubr.f32.mxu0 0.0
    %1059 = vmatmul.mubr.f32.gmra.mrb[0].mxu0 %v983
    %v1060 = vpop.f32.mrb[0].mxu0
    %v1061 = vadd.f32 %v964, %v1060
    %v1062 = vpop.f32.mrb[0].mxu0
    %1063 = vmatprep.mubr.f32.mxu0 0.0
    %1064 = vmatmul.mubr.f32.gmra.mrb[0].mxu0 %v986
    %v1065 = vpop.f32.mrb[0].mxu0
    %v1066 = vadd.f32 %v969, %v1065
    %v1067 = vpop.f32.mrb[0].mxu0
    %1068 = vmatprep.mubr.f32.mxu0 0.0
    %1069 = vmatmul.mubr.f32.gmra.mrb[0].mxu0 %v989
    %v1070 = vpop.f32.mrb[0].mxu0
    %v1071 = vadd.f32 %v974, %v1070
    %v1072 = vpop.f32.mrb[0].mxu0
    %1073 = vmatprep.mubr.f32.mxu0 0.0
    %1074 = vmatmul.mubr.f32.gmra.mrb[0].mxu0 %v992
    %v1075 = vpop.f32.mrb[0].mxu0
    %v1076 = vadd.f32 %v979, %v1075
    %v1077 = vpop.f32.mrb[0].mxu0
    %1078 = vdwg.mxu0
    %v1079 = vmul.f32 %v1061, 0.5
    %v1080 = vmul.f32 %v1066, 0.5
    %v1081 = vmul.f32 %v1071, 0.5
    %v1082 = vmul.f32 %v1076, 0.5
    %v1083 = vmul.f32 %v1061, 0.70710677
    %v1084 = vmul.f32 %v1066, 0.70710677
    %v1085 = vmul.f32 %v1071, 0.70710677
    %v1086 = vmul.f32 %v1076, 0.70710677
    %vm1087 = vcmp.ge.f32.partialorder %v1083, 0.0
    %vm1088 = vcmp.ge.f32.partialorder %v1084, 0.0
    %vm1089 = vcmp.ge.f32.partialorder %v1085, 0.0
    %vm1090 = vcmp.ge.f32.partialorder %v1086, 0.0
    %v1091 = vsel %vm1087, 1.0, -1.0
    %v1092 = vsel %vm1088, 1.0, -1.0
    %v1093 = vsel %vm1089, 1.0, -1.0
    %v1094 = vsel %vm1090, 1.0, -1.0
    %v1095 = vand.u32 2147483647, %v1083
    %v1096 = vand.u32 2147483647, %v1084
    %v1097 = vand.u32 2147483647, %v1085
    %v1098 = vand.u32 2147483647, %v1086
    %v1099 = vmul.f32 %v1095, 0.3275911
    %v1100 = vmul.f32 %v1096, 0.3275911
    %v1101 = vmul.f32 %v1097, 0.3275911
    %v1102 = vmul.f32 %v1098, 0.3275911
    %v1103 = vadd.f32 %v1099, 1.0
    %v1104 = vadd.f32 %v1100, 1.0
    %v1105 = vadd.f32 %v1101, 1.0
    %v1106 = vadd.f32 %v1102, 1.0
    %v1107 = vrcp.pop %v1103
    %v1108 = vrcp.pop %v1104
    %v1109 = vrcp.pop %v1105
    %v1110 = vrcp.pop %v1106
    %v1111 = vmul.f32 %v1103, %v1107
    %v1112 = vmul.f32 %v1104, %v1108
    %v1113 = vmul.f32 %v1105, %v1109
    %v1114 = vmul.f32 %v1106, %v1110
    %v1115 = vsub.f32 2.0, %v1111
    %v1116 = vsub.f32 2.0, %v1112
    %v1117 = vsub.f32 2.0, %v1113
    %v1118 = vsub.f32 2.0, %v1114
    %v1119 = vmul.f32 %v1107, %v1115
    %v1120 = vmul.f32 %v1108, %v1116
    %v1121 = vmul.f32 %v1109, %v1117
    %v1122 = vmul.f32 %v1110, %v1118
    %v1123 = vmul.f32 %v1119, 1.0614054
    %v1124 = vmul.f32 %v1120, 1.0614054
    %v1125 = vmul.f32 %v1121, 1.0614054
    %v1126 = vmul.f32 %v1122, 1.0614054
    %v1127 = vadd.f32 %v1123, -1.4531521
    %v1128 = vadd.f32 %v1124, -1.4531521
    %v1129 = vadd.f32 %v1125, -1.4531521
    %v1130 = vadd.f32 %v1126, -1.4531521
    %v1131 = vmul.f32 %v1127, %v1119
    %v1132 = vmul.f32 %v1128, %v1120
    %v1133 = vmul.f32 %v1129, %v1121
    %v1134 = vmul.f32 %v1130, %v1122
    %v1135 = vadd.f32 %v1131, 1.4214138
    %v1136 = vadd.f32 %v1132, 1.4214138
    %v1137 = vadd.f32 %v1133, 1.4214138
    %v1138 = vadd.f32 %v1134, 1.4214138
    %v1139 = vmul.f32 %v1135, %v1119
    %v1140 = vmul.f32 %v1136, %v1120
    %v1141 = vmul.f32 %v1137, %v1121
    %v1142 = vmul.f32 %v1138, %v1122
    %v1143 = vadd.f32 %v1139, -0.28449672
    %v1144 = vadd.f32 %v1140, -0.28449672
    %v1145 = vadd.f32 %v1141, -0.28449672
    %v1146 = vadd.f32 %v1142, -0.28449672
    %v1147 = vmul.f32 %v1143, %v1119
    %v1148 = vmul.f32 %v1144, %v1120
    %v1149 = vmul.f32 %v1145, %v1121
    %v1150 = vmul.f32 %v1146, %v1122
    %v1151 = vadd.f32 %v1147, 0.2548296
    %v1152 = vadd.f32 %v1148, 0.2548296
    %v1153 = vadd.f32 %v1149, 0.2548296
    %v1154 = vadd.f32 %v1150, 0.2548296
    %v1155 = vmul.f32 %v1151, %v1119
    %v1156 = vmul.f32 %v1152, %v1120
    %v1157 = vmul.f32 %v1153, %v1121
    %v1158 = vmul.f32 %v1154, %v1122
    %v1159 = vsub.f32 0.0, %v1095
    %v1160 = vsub.f32 0.0, %v1096
    %v1161 = vsub.f32 0.0, %v1097
    %v1162 = vsub.f32 0.0, %v1098
    %v1163 = vmul.f32 %v1159, %v1095
    %v1164 = vmul.f32 %v1160, %v1096
    %v1165 = vmul.f32 %v1161, %v1097
    %v1166 = vmul.f32 %v1162, %v1098
    %v1167 = vmul.f32 %v1163, 1.442695
    %v1168 = vpow.pop %v1167
    %v1169 = vmul.f32 %v1164, 1.442695
    %v1170 = vpow.pop %v1169
    %v1171 = vmul.f32 %v1165, 1.442695
    %v1172 = vpow.pop %v1171
    %v1173 = vmul.f32 %v1166, 1.442695
    %v1174 = vpow.pop %v1173
    %v1175 = vmul.f32 %v1155, %v1168
    %v1176 = vmul.f32 %v1156, %v1170
    %v1177 = vmul.f32 %v1157, %v1172
    %v1178 = vmul.f32 %v1158, %v1174
    %v1179 = vsub.f32 1.0, %v1175
    %v1180 = vsub.f32 1.0, %v1176
    %v1181 = vsub.f32 1.0, %v1177
    %v1182 = vsub.f32 1.0, %v1178
    %v1183 = vmul.f32 %v1091, %v1179
    %v1184 = vmul.f32 %v1092, %v1180
    %v1185 = vmul.f32 %v1093, %v1181
    %v1186 = vmul.f32 %v1094, %v1182
    %v1187 = vadd.f32 %v1183, 1.0
    %v1188 = vadd.f32 %v1184, 1.0
    %v1189 = vadd.f32 %v1185, 1.0
    %v1190 = vadd.f32 %v1186, 1.0
    %v1191 = vmul.f32 %v1079, %v1187
    %v1192 = vmul.f32 %v1080, %v1188
    %v1193 = vmul.f32 %v1081, %v1189
    %v1194 = vmul.f32 %v1082, %v1190
    %s1195 = scalar_lea.vmem %s2, 64
    %v1196 = vld [vmem:[%s1195] sm:$0xff]
    %v1197 = vld [vmem:[%s1195 + $0x8] sm:$0xff]
    %v1198 = vld [vmem:[%s1195 + $0x10] sm:$0xff]
    %v1199 = vld [vmem:[%s1195 + $0x18] sm:$0xff]
    %s1200 = scalar_lea.vmem %s3, 64
    %v1201 = vld [vmem:[%s1200] sm:$0xff]
    %v1202 = vld [vmem:[%s1200 + $0x8] sm:$0xff]
    %v1203 = vld [vmem:[%s1200 + $0x10] sm:$0xff]
    %v1204 = vld [vmem:[%s1200 + $0x18] sm:$0xff]
    %1206 = vset.pattern.permute.xlu0 0
    %1207 = vperm.xlu0 %1206, %v1201
    %v1208 = vpop.permute.xlu0 %1207
    %1211 = vset.pattern.permute.xlu0 0
    %1212 = vperm.xlu0 %1211, %v1202
    %v1213 = vpop.permute.xlu0 %1212
    %1216 = vset.pattern.permute.xlu0 0
    %1217 = vperm.xlu0 %1216, %v1203
    %v1218 = vpop.permute.xlu0 %1217
    %1221 = vset.pattern.permute.xlu0 0
    %1222 = vperm.xlu0 %1221, %v1204
    %v1223 = vpop.permute.xlu0 %1222
    %vm1225 = vcmask 261120
    %v1227 = vsel %vm1225, %v1196, 0
    %v1230 = vsel %vm1225, %v1197, 0
    %v1233 = vsel %vm1225, %v1198, 0
    %v1236 = vsel %vm1225, %v1199, 0
    %1238 = vmatprep.subr.mxu0 0.0
    %1239 = vmatpush1.msra.mxu0 %v1191
    %1240 = vmatprep.subr.mxu0 0.0
    %1241 = vmatpush1.msra.mxu0 %v1192
    %1242 = vmatprep.subr.mxu0 0.0
    %1243 = vmatpush1.msra.mxu0 %v1193
    %1244 = vmatprep.subr.mxu0 0.0
    %1245 = vmatpush1.msra.mxu0 %v1194
    %1246 = vmatprep.subr.mxu0 0.0
    %1247 = vmatpush1.msra.mxu0 0.0
    %1248 = vmatprep.subr.mxu0 0.0
    %1249 = vmatpush1.msra.mxu0 0.0
    %1250 = vmatprep.subr.mxu0 0.0
    %1251 = vmatpush1.msra.mxu0 0.0
    %1252 = vmatprep.subr.mxu0 0.0
    %1253 = vmatpush1.msra.mxu0 0.0
    %1254 = vmatprep.subr.mxu0 0.0
    %1255 = vmatpush1.msra.mxu0 0.0
    %1256 = vmatprep.subr.mxu0 0.0
    %1257 = vmatpush1.msra.mxu0 0.0
    %1258 = vmatprep.subr.mxu0 0.0
    %1259 = vmatpush1.msra.mxu0 0.0
    %1260 = vmatprep.subr.mxu0 0.0
    %1261 = vmatpush1.msra.mxu0 0.0
    %1262 = vmatprep.subr.mxu0 0.0
    %1263 = vmatpush1.msra.mxu0 0.0
    %1264 = vmatprep.subr.mxu0 0.0
    %1265 = vmatpush1.msra.mxu0 0.0
    %1266 = vmatprep.subr.mxu0 0.0
    %1267 = vmatpush1.msra.mxu0 0.0
    %1268 = vmatprep.subr.mxu0 0.0
    %1269 = vmatpush1.msra.mxu0 0.0
    %1270 = vmatprep.subr.mxu0 0.0
    %1271 = vmatpush1.msra.mxu0 0.0
    %1272 = vmatprep.subr.mxu0 0.0
    %1273 = vmatpush1.msra.mxu0 0.0
    %1274 = vmatprep.subr.mxu0 0.0
    %1275 = vmatpush1.msra.mxu0 0.0
    %1276 = vmatprep.subr.mxu0 0.0
    %1277 = vmatpush1.msra.mxu0 0.0
    %1278 = vmatprep.subr.mxu0 0.0
    %1279 = vmatpush1.msra.mxu0 0.0
    %1280 = vmatprep.subr.mxu0 0.0
    %1281 = vmatpush1.msra.mxu0 0.0
    %1282 = vmatprep.subr.mxu0 0.0
    %1283 = vmatpush1.msra.mxu0 0.0
    %1284 = vmatprep.subr.mxu0 0.0
    %1285 = vmatpush1.msra.mxu0 0.0
    %1286 = vmatprep.subr.mxu0 0.0
    %1287 = vmatpush1.msra.mxu0 0.0
    %1288 = vmatprep.subr.mxu0 0.0
    %1289 = vmatpush1.msra.mxu0 0.0
    %1290 = vmatprep.subr.mxu0 0.0
    %1291 = vmatpush1.msra.mxu0 0.0
    %1292 = vmatprep.subr.mxu0 0.0
    %1293 = vmatpush1.msra.mxu0 0.0
    %1294 = vmatprep.subr.mxu0 0.0
    %1295 = vmatpush1.msra.mxu0 0.0
    %1296 = vmatprep.subr.mxu0 0.0
    %1297 = vmatpush1.msra.mxu0 0.0
    %1298 = vmatprep.subr.mxu0 0.0
    %1299 = vmatpush1.msra.mxu0 0.0
    %1300 = vmatprep.subr.mxu0 0.0
    %1301 = vmatpush1.msra.mxu0 0.0
    %1302 = vmatprep.mubr.f32.mxu0 0.0
    %1303 = vmatmul.mubr.f32.gmra.mrb[0].mxu0 %v1227
    %v1304 = vpop.f32.mrb[0].mxu0
    %v1305 = vadd.f32 %v1208, %v1304
    %v1306 = vpop.f32.mrb[0].mxu0
    %1307 = vmatprep.mubr.f32.mxu0 0.0
    %1308 = vmatmul.mubr.f32.gmra.mrb[0].mxu0 %v1230
    %v1309 = vpop.f32.mrb[0].mxu0
    %v1310 = vadd.f32 %v1213, %v1309
    %v1311 = vpop.f32.mrb[0].mxu0
    %1312 = vmatprep.mubr.f32.mxu0 0.0
    %1313 = vmatmul.mubr.f32.gmra.mrb[0].mxu0 %v1233
    %v1314 = vpop.f32.mrb[0].mxu0
    %v1315 = vadd.f32 %v1218, %v1314
    %v1316 = vpop.f32.mrb[0].mxu0
    %1317 = vmatprep.mubr.f32.mxu0 0.0
    %1318 = vmatmul.mubr.f32.gmra.mrb[0].mxu0 %v1236
    %v1319 = vpop.f32.mrb[0].mxu0
    %v1320 = vadd.f32 %v1223, %v1319
    %v1321 = vpop.f32.mrb[0].mxu0
    %1322 = vdwg.mxu0
    %v1323 = vmul.f32 %v1305, 0.5
    %v1324 = vmul.f32 %v1310, 0.5
    %v1325 = vmul.f32 %v1315, 0.5
    %v1326 = vmul.f32 %v1320, 0.5
    %v1327 = vmul.f32 %v1305, 0.70710677
    %v1328 = vmul.f32 %v1310, 0.70710677
    %v1329 = vmul.f32 %v1315, 0.70710677
    %v1330 = vmul.f32 %v1320, 0.70710677
    %vm1331 = vcmp.ge.f32.partialorder %v1327, 0.0
    %vm1332 = vcmp.ge.f32.partialorder %v1328, 0.0
    %vm1333 = vcmp.ge.f32.partialorder %v1329, 0.0
    %vm1334 = vcmp.ge.f32.partialorder %v1330, 0.0
    %v1335 = vsel %vm1331, 1.0, -1.0
    %v1336 = vsel %vm1332, 1.0, -1.0
    %v1337 = vsel %vm1333, 1.0, -1.0
    %v1338 = vsel %vm1334, 1.0, -1.0
    %v1339 = vand.u32 2147483647, %v1327
    %v1340 = vand.u32 2147483647, %v1328
    %v1341 = vand.u32 2147483647, %v1329
    %v1342 = vand.u32 2147483647, %v1330
    %v1343 = vmul.f32 %v1339, 0.3275911
    %v1344 = vmul.f32 %v1340, 0.3275911
    %v1345 = vmul.f32 %v1341, 0.3275911
    %v1346 = vmul.f32 %v1342, 0.3275911
    %v1347 = vadd.f32 %v1343, 1.0
    %v1348 = vadd.f32 %v1344, 1.0
    %v1349 = vadd.f32 %v1345, 1.0
    %v1350 = vadd.f32 %v1346, 1.0
    %v1351 = vrcp.pop %v1347
    %v1352 = vrcp.pop %v1348
    %v1353 = vrcp.pop %v1349
    %v1354 = vrcp.pop %v1350
    %v1355 = vmul.f32 %v1347, %v1351
    %v1356 = vmul.f32 %v1348, %v1352
    %v1357 = vmul.f32 %v1349, %v1353
    %v1358 = vmul.f32 %v1350, %v1354
    %v1359 = vsub.f32 2.0, %v1355
    %v1360 = vsub.f32 2.0, %v1356
    %v1361 = vsub.f32 2.0, %v1357
    %v1362 = vsub.f32 2.0, %v1358
    %v1363 = vmul.f32 %v1351, %v1359
    %v1364 = vmul.f32 %v1352, %v1360
    %v1365 = vmul.f32 %v1353, %v1361
    %v1366 = vmul.f32 %v1354, %v1362
    %v1367 = vmul.f32 %v1363, 1.0614054
    %v1368 = vmul.f32 %v1364, 1.0614054
    %v1369 = vmul.f32 %v1365, 1.0614054
    %v1370 = vmul.f32 %v1366, 1.0614054
    %v1371 = vadd.f32 %v1367, -1.4531521
    %v1372 = vadd.f32 %v1368, -1.4531521
    %v1373 = vadd.f32 %v1369, -1.4531521
    %v1374 = vadd.f32 %v1370, -1.4531521
    %v1375 = vmul.f32 %v1371, %v1363
    %v1376 = vmul.f32 %v1372, %v1364
    %v1377 = vmul.f32 %v1373, %v1365
    %v1378 = vmul.f32 %v1374, %v1366
    %v1379 = vadd.f32 %v1375, 1.4214138
    %v1380 = vadd.f32 %v1376, 1.4214138
    %v1381 = vadd.f32 %v1377, 1.4214138
    %v1382 = vadd.f32 %v1378, 1.4214138
    %v1383 = vmul.f32 %v1379, %v1363
    %v1384 = vmul.f32 %v1380, %v1364
    %v1385 = vmul.f32 %v1381, %v1365
    %v1386 = vmul.f32 %v1382, %v1366
    %v1387 = vadd.f32 %v1383, -0.28449672
    %v1388 = vadd.f32 %v1384, -0.28449672
    %v1389 = vadd.f32 %v1385, -0.28449672
    %v1390 = vadd.f32 %v1386, -0.28449672
    %v1391 = vmul.f32 %v1387, %v1363
    %v1392 = vmul.f32 %v1388, %v1364
    %v1393 = vmul.f32 %v1389, %v1365
    %v1394 = vmul.f32 %v1390, %v1366
    %v1395 = vadd.f32 %v1391, 0.2548296
    %v1396 = vadd.f32 %v1392, 0.2548296
    %v1397 = vadd.f32 %v1393, 0.2548296
    %v1398 = vadd.f32 %v1394, 0.2548296
    %v1399 = vmul.f32 %v1395, %v1363
    %v1400 = vmul.f32 %v1396, %v1364
    %v1401 = vmul.f32 %v1397, %v1365
    %v1402 = vmul.f32 %v1398, %v1366
    %v1403 = vsub.f32 0.0, %v1339
    %v1404 = vsub.f32 0.0, %v1340
    %v1405 = vsub.f32 0.0, %v1341
    %v1406 = vsub.f32 0.0, %v1342
    %v1407 = vmul.f32 %v1403, %v1339
    %v1408 = vmul.f32 %v1404, %v1340
    %v1409 = vmul.f32 %v1405, %v1341
    %v1410 = vmul.f32 %v1406, %v1342
    %v1411 = vmul.f32 %v1407, 1.442695
    %v1412 = vpow.pop %v1411
    %v1413 = vmul.f32 %v1408, 1.442695
    %v1414 = vpow.pop %v1413
    %v1415 = vmul.f32 %v1409, 1.442695
    %v1416 = vpow.pop %v1415
    %v1417 = vmul.f32 %v1410, 1.442695
    %v1418 = vpow.pop %v1417
    %v1419 = vmul.f32 %v1399, %v1412
    %v1420 = vmul.f32 %v1400, %v1414
    %v1421 = vmul.f32 %v1401, %v1416
    %v1422 = vmul.f32 %v1402, %v1418
    %v1423 = vsub.f32 1.0, %v1419
    %v1424 = vsub.f32 1.0, %v1420
    %v1425 = vsub.f32 1.0, %v1421
    %v1426 = vsub.f32 1.0, %v1422
    %v1427 = vmul.f32 %v1335, %v1423
    %v1428 = vmul.f32 %v1336, %v1424
    %v1429 = vmul.f32 %v1337, %v1425
    %v1430 = vmul.f32 %v1338, %v1426
    %v1431 = vadd.f32 %v1427, 1.0
    %v1432 = vadd.f32 %v1428, 1.0
    %v1433 = vadd.f32 %v1429, 1.0
    %v1434 = vadd.f32 %v1430, 1.0
    %v1435 = vmul.f32 %v1323, %v1431
    %v1436 = vmul.f32 %v1324, %v1432
    %v1437 = vmul.f32 %v1325, %v1433
    %v1438 = vmul.f32 %v1326, %v1434
    %s1439 = scalar_lea.vmem %s2, 128
    %v1440 = vld [vmem:[%s1439] sm:$0xff]
    %v1441 = vld [vmem:[%s1439 + $0x8] sm:$0xff]
    %v1442 = vld [vmem:[%s1439 + $0x10] sm:$0xff]
    %v1443 = vld [vmem:[%s1439 + $0x18] sm:$0xff]
    %s1444 = scalar_lea.vmem %s3, 128
    %v1445 = vld [vmem:[%s1444] sm:$0xff]
    %v1446 = vld [vmem:[%s1444 + $0x8] sm:$0xff]
    %v1447 = vld [vmem:[%s1444 + $0x10] sm:$0xff]
    %v1448 = vld [vmem:[%s1444 + $0x18] sm:$0xff]
    %1450 = vset.pattern.permute.xlu0 0
    %1451 = vperm.xlu0 %1450, %v1445
    %v1452 = vpop.permute.xlu0 %1451
    %1455 = vset.pattern.permute.xlu0 0
    %1456 = vperm.xlu0 %1455, %v1446
    %v1457 = vpop.permute.xlu0 %1456
    %1460 = vset.pattern.permute.xlu0 0
    %1461 = vperm.xlu0 %1460, %v1447
    %v1462 = vpop.permute.xlu0 %1461
    %1465 = vset.pattern.permute.xlu0 0
    %1466 = vperm.xlu0 %1465, %v1448
    %v1467 = vpop.permute.xlu0 %1466
    %v1470 = vsel %vm1225, %v1440, 0
    %v1473 = vsel %vm1225, %v1441, 0
    %v1476 = vsel %vm1225, %v1442, 0
    %v1479 = vsel %vm1225, %v1443, 0
    %1481 = vmatprep.subr.mxu0 0.0
    %1482 = vmatpush1.msra.mxu0 %v1435
    %1483 = vmatprep.subr.mxu0 0.0
    %1484 = vmatpush1.msra.mxu0 %v1436
    %1485 = vmatprep.subr.mxu0 0.0
    %1486 = vmatpush1.msra.mxu0 %v1437
    %1487 = vmatprep.subr.mxu0 0.0
    %1488 = vmatpush1.msra.mxu0 %v1438
    %1489 = vmatprep.subr.mxu0 0.0
    %1490 = vmatpush1.msra.mxu0 0.0
    %1491 = vmatprep.subr.mxu0 0.0
    %1492 = vmatpush1.msra.mxu0 0.0
    %1493 = vmatprep.subr.mxu0 0.0
    %1494 = vmatpush1.msra.mxu0 0.0
    %1495 = vmatprep.subr.mxu0 0.0
    %1496 = vmatpush1.msra.mxu0 0.0
    %1497 = vmatprep.subr.mxu0 0.0
    %1498 = vmatpush1.msra.mxu0 0.0
    %1499 = vmatprep.subr.mxu0 0.0
    %1500 = vmatpush1.msra.mxu0 0.0
    %1501 = vmatprep.subr.mxu0 0.0
    %1502 = vmatpush1.msra.mxu0 0.0
    %1503 = vmatprep.subr.mxu0 0.0
    %1504 = vmatpush1.msra.mxu0 0.0
    %1505 = vmatprep.subr.mxu0 0.0
    %1506 = vmatpush1.msra.mxu0 0.0
    %1507 = vmatprep.subr.mxu0 0.0
    %1508 = vmatpush1.msra.mxu0 0.0
    %1509 = vmatprep.subr.mxu0 0.0
    %1510 = vmatpush1.msra.mxu0 0.0
    %1511 = vmatprep.subr.mxu0 0.0
    %1512 = vmatpush1.msra.mxu0 0.0
    %1513 = vmatprep.subr.mxu0 0.0
    %1514 = vmatpush1.msra.mxu0 0.0
    %1515 = vmatprep.subr.mxu0 0.0
    %1516 = vmatpush1.msra.mxu0 0.0
    %1517 = vmatprep.subr.mxu0 0.0
    %1518 = vmatpush1.msra.mxu0 0.0
    %1519 = vmatprep.subr.mxu0 0.0
    %1520 = vmatpush1.msra.mxu0 0.0
    %1521 = vmatprep.subr.mxu0 0.0
    %1522 = vmatpush1.msra.mxu0 0.0
    %1523 = vmatprep.subr.mxu0 0.0
    %1524 = vmatpush1.msra.mxu0 0.0
    %1525 = vmatprep.subr.mxu0 0.0
    %1526 = vmatpush1.msra.mxu0 0.0
    %1527 = vmatprep.subr.mxu0 0.0
    %1528 = vmatpush1.msra.mxu0 0.0
    %1529 = vmatprep.subr.mxu0 0.0
    %1530 = vmatpush1.msra.mxu0 0.0
    %1531 = vmatprep.subr.mxu0 0.0
    %1532 = vmatpush1.msra.mxu0 0.0
    %1533 = vmatprep.subr.mxu0 0.0
    %1534 = vmatpush1.msra.mxu0 0.0
    %1535 = vmatprep.subr.mxu0 0.0
    %1536 = vmatpush1.msra.mxu0 0.0
    %1537 = vmatprep.subr.mxu0 0.0
    %1538 = vmatpush1.msra.mxu0 0.0
    %1539 = vmatprep.subr.mxu0 0.0
    %1540 = vmatpush1.msra.mxu0 0.0
    %1541 = vmatprep.subr.mxu0 0.0
    %1542 = vmatpush1.msra.mxu0 0.0
    %1543 = vmatprep.subr.mxu0 0.0
    %1544 = vmatpush1.msra.mxu0 0.0
    %1545 = vmatprep.mubr.f32.mxu0 0.0
    %1546 = vmatmul.mubr.f32.gmra.mrb[0].mxu0 %v1470
    %v1547 = vpop.f32.mrb[0].mxu0
    %v1548 = vadd.f32 %v1452, %v1547
    %v1549 = vpop.f32.mrb[0].mxu0
    %1550 = vmatprep.mubr.f32.mxu0 0.0
    %1551 = vmatmul.mubr.f32.gmra.mrb[0].mxu0 %v1473
    %v1552 = vpop.f32.mrb[0].mxu0
    %v1553 = vadd.f32 %v1457, %v1552
    %v1554 = vpop.f32.mrb[0].mxu0
    %1555 = vmatprep.mubr.f32.mxu0 0.0
    %1556 = vmatmul.mubr.f32.gmra.mrb[0].mxu0 %v1476
    %v1557 = vpop.f32.mrb[0].mxu0
    %v1558 = vadd.f32 %v1462, %v1557
    %v1559 = vpop.f32.mrb[0].mxu0
    %1560 = vmatprep.mubr.f32.mxu0 0.0
    %1561 = vmatmul.mubr.f32.gmra.mrb[0].mxu0 %v1479
    %v1562 = vpop.f32.mrb[0].mxu0
    %v1563 = vadd.f32 %v1467, %v1562
    %v1564 = vpop.f32.mrb[0].mxu0
    %1565 = vdwg.mxu0
    %v1566 = vmul.f32 %v1548, 0.5
    %v1567 = vmul.f32 %v1553, 0.5
    %v1568 = vmul.f32 %v1558, 0.5
    %v1569 = vmul.f32 %v1563, 0.5
    %v1570 = vmul.f32 %v1548, 0.70710677
    %v1571 = vmul.f32 %v1553, 0.70710677
    %v1572 = vmul.f32 %v1558, 0.70710677
    %v1573 = vmul.f32 %v1563, 0.70710677
    %vm1574 = vcmp.ge.f32.partialorder %v1570, 0.0
    %vm1575 = vcmp.ge.f32.partialorder %v1571, 0.0
    %vm1576 = vcmp.ge.f32.partialorder %v1572, 0.0
    %vm1577 = vcmp.ge.f32.partialorder %v1573, 0.0
    %v1578 = vsel %vm1574, 1.0, -1.0
    %v1579 = vsel %vm1575, 1.0, -1.0
    %v1580 = vsel %vm1576, 1.0, -1.0
    %v1581 = vsel %vm1577, 1.0, -1.0
    %v1582 = vand.u32 2147483647, %v1570
    %v1583 = vand.u32 2147483647, %v1571
    %v1584 = vand.u32 2147483647, %v1572
    %v1585 = vand.u32 2147483647, %v1573
    %v1586 = vmul.f32 %v1582, 0.3275911
    %v1587 = vmul.f32 %v1583, 0.3275911
    %v1588 = vmul.f32 %v1584, 0.3275911
    %v1589 = vmul.f32 %v1585, 0.3275911
    %v1590 = vadd.f32 %v1586, 1.0
    %v1591 = vadd.f32 %v1587, 1.0
    %v1592 = vadd.f32 %v1588, 1.0
    %v1593 = vadd.f32 %v1589, 1.0
    %v1594 = vrcp.pop %v1590
    %v1595 = vrcp.pop %v1591
    %v1596 = vrcp.pop %v1592
    %v1597 = vrcp.pop %v1593
    %v1598 = vmul.f32 %v1590, %v1594
    %v1599 = vmul.f32 %v1591, %v1595
    %v1600 = vmul.f32 %v1592, %v1596
    %v1601 = vmul.f32 %v1593, %v1597
    %v1602 = vsub.f32 2.0, %v1598
    %v1603 = vsub.f32 2.0, %v1599
    %v1604 = vsub.f32 2.0, %v1600
    %v1605 = vsub.f32 2.0, %v1601
    %v1606 = vmul.f32 %v1594, %v1602
    %v1607 = vmul.f32 %v1595, %v1603
    %v1608 = vmul.f32 %v1596, %v1604
    %v1609 = vmul.f32 %v1597, %v1605
    %v1610 = vmul.f32 %v1606, 1.0614054
    %v1611 = vmul.f32 %v1607, 1.0614054
    %v1612 = vmul.f32 %v1608, 1.0614054
    %v1613 = vmul.f32 %v1609, 1.0614054
    %v1614 = vadd.f32 %v1610, -1.4531521
    %v1615 = vadd.f32 %v1611, -1.4531521
    %v1616 = vadd.f32 %v1612, -1.4531521
    %v1617 = vadd.f32 %v1613, -1.4531521
    %v1618 = vmul.f32 %v1614, %v1606
    %v1619 = vmul.f32 %v1615, %v1607
    %v1620 = vmul.f32 %v1616, %v1608
    %v1621 = vmul.f32 %v1617, %v1609
    %v1622 = vadd.f32 %v1618, 1.4214138
    %v1623 = vadd.f32 %v1619, 1.4214138
    %v1624 = vadd.f32 %v1620, 1.4214138
    %v1625 = vadd.f32 %v1621, 1.4214138
    %v1626 = vmul.f32 %v1622, %v1606
    %v1627 = vmul.f32 %v1623, %v1607
    %v1628 = vmul.f32 %v1624, %v1608
    %v1629 = vmul.f32 %v1625, %v1609
    %v1630 = vadd.f32 %v1626, -0.28449672
    %v1631 = vadd.f32 %v1627, -0.28449672
    %v1632 = vadd.f32 %v1628, -0.28449672
    %v1633 = vadd.f32 %v1629, -0.28449672
    %v1634 = vmul.f32 %v1630, %v1606
    %v1635 = vmul.f32 %v1631, %v1607
    %v1636 = vmul.f32 %v1632, %v1608
    %v1637 = vmul.f32 %v1633, %v1609
    %v1638 = vadd.f32 %v1634, 0.2548296
    %v1639 = vadd.f32 %v1635, 0.2548296
    %v1640 = vadd.f32 %v1636, 0.2548296
    %v1641 = vadd.f32 %v1637, 0.2548296
    %v1642 = vmul.f32 %v1638, %v1606
    %v1643 = vmul.f32 %v1639, %v1607
    %v1644 = vmul.f32 %v1640, %v1608
    %v1645 = vmul.f32 %v1641, %v1609
    %v1646 = vsub.f32 0.0, %v1582
    %v1647 = vsub.f32 0.0, %v1583
    %v1648 = vsub.f32 0.0, %v1584
    %v1649 = vsub.f32 0.0, %v1585
    %v1650 = vmul.f32 %v1646, %v1582
    %v1651 = vmul.f32 %v1647, %v1583
    %v1652 = vmul.f32 %v1648, %v1584
    %v1653 = vmul.f32 %v1649, %v1585
    %v1654 = vmul.f32 %v1650, 1.442695
    %v1655 = vpow.pop %v1654
    %v1656 = vmul.f32 %v1651, 1.442695
    %v1657 = vpow.pop %v1656
    %v1658 = vmul.f32 %v1652, 1.442695
    %v1659 = vpow.pop %v1658
    %v1660 = vmul.f32 %v1653, 1.442695
    %v1661 = vpow.pop %v1660
    %v1662 = vmul.f32 %v1642, %v1655
    %v1663 = vmul.f32 %v1643, %v1657
    %v1664 = vmul.f32 %v1644, %v1659
    %v1665 = vmul.f32 %v1645, %v1661
    %v1666 = vsub.f32 1.0, %v1662
    %v1667 = vsub.f32 1.0, %v1663
    %v1668 = vsub.f32 1.0, %v1664
    %v1669 = vsub.f32 1.0, %v1665
    %v1670 = vmul.f32 %v1578, %v1666
    %v1671 = vmul.f32 %v1579, %v1667
    %v1672 = vmul.f32 %v1580, %v1668
    %v1673 = vmul.f32 %v1581, %v1669
    %v1674 = vadd.f32 %v1670, 1.0
    %v1675 = vadd.f32 %v1671, 1.0
    %v1676 = vadd.f32 %v1672, 1.0
    %v1677 = vadd.f32 %v1673, 1.0
    %v1678 = vmul.f32 %v1566, %v1674
    %v1679 = vmul.f32 %v1567, %v1675
    %v1680 = vmul.f32 %v1568, %v1676
    %v1681 = vmul.f32 %v1569, %v1677
    %s1682 = scalar_lea.vmem %s2, 192
    %v1683 = vld [vmem:[%s1682] sm:$0xff]
    %s1684 = scalar_lea.vmem %s3, 192
    %v1685 = vld [vmem:[%s1684] sm:$0xff]
    %1687 = vset.pattern.permute.xlu0 0
    %1688 = vperm.xlu0 %1687, %v1685
    %v1689 = vpop.permute.xlu0 %1688
    %v1692 = vsel %vm1225, %v1683, 0
    %1694 = vmatprep.subr.mxu0 0.0
    %1695 = vmatpush1.msra.mxu0 %v1678
    %1696 = vmatprep.subr.mxu0 0.0
    %1697 = vmatpush1.msra.mxu0 %v1679
    %1698 = vmatprep.subr.mxu0 0.0
    %1699 = vmatpush1.msra.mxu0 %v1680
    %1700 = vmatprep.subr.mxu0 0.0
    %1701 = vmatpush1.msra.mxu0 %v1681
    %1702 = vmatprep.subr.mxu0 0.0
    %1703 = vmatpush1.msra.mxu0 0.0
    %1704 = vmatprep.subr.mxu0 0.0
    %1705 = vmatpush1.msra.mxu0 0.0
    %1706 = vmatprep.subr.mxu0 0.0
    %1707 = vmatpush1.msra.mxu0 0.0
    %1708 = vmatprep.subr.mxu0 0.0
    %1709 = vmatpush1.msra.mxu0 0.0
    %1710 = vmatprep.subr.mxu0 0.0
    %1711 = vmatpush1.msra.mxu0 0.0
    %1712 = vmatprep.subr.mxu0 0.0
    %1713 = vmatpush1.msra.mxu0 0.0
    %1714 = vmatprep.subr.mxu0 0.0
    %1715 = vmatpush1.msra.mxu0 0.0
    %1716 = vmatprep.subr.mxu0 0.0
    %1717 = vmatpush1.msra.mxu0 0.0
    %1718 = vmatprep.subr.mxu0 0.0
    %1719 = vmatpush1.msra.mxu0 0.0
    %1720 = vmatprep.subr.mxu0 0.0
    %1721 = vmatpush1.msra.mxu0 0.0
    %1722 = vmatprep.subr.mxu0 0.0
    %1723 = vmatpush1.msra.mxu0 0.0
    %1724 = vmatprep.subr.mxu0 0.0
    %1725 = vmatpush1.msra.mxu0 0.0
    %1726 = vmatprep.subr.mxu0 0.0
    %1727 = vmatpush1.msra.mxu0 0.0
    %1728 = vmatprep.subr.mxu0 0.0
    %1729 = vmatpush1.msra.mxu0 0.0
    %1730 = vmatprep.subr.mxu0 0.0
    %1731 = vmatpush1.msra.mxu0 0.0
    %1732 = vmatprep.subr.mxu0 0.0
    %1733 = vmatpush1.msra.mxu0 0.0
    %1734 = vmatprep.subr.mxu0 0.0
    %1735 = vmatpush1.msra.mxu0 0.0
    %1736 = vmatprep.subr.mxu0 0.0
    %1737 = vmatpush1.msra.mxu0 0.0
    %1738 = vmatprep.subr.mxu0 0.0
    %1739 = vmatpush1.msra.mxu0 0.0
    %1740 = vmatprep.subr.mxu0 0.0
    %1741 = vmatpush1.msra.mxu0 0.0
    %1742 = vmatprep.subr.mxu0 0.0
    %1743 = vmatpush1.msra.mxu0 0.0
    %1744 = vmatprep.subr.mxu0 0.0
    %1745 = vmatpush1.msra.mxu0 0.0
    %1746 = vmatprep.subr.mxu0 0.0
    %1747 = vmatpush1.msra.mxu0 0.0
    %1748 = vmatprep.subr.mxu0 0.0
    %1749 = vmatpush1.msra.mxu0 0.0
    %1750 = vmatprep.subr.mxu0 0.0
    %1751 = vmatpush1.msra.mxu0 0.0
    %1752 = vmatprep.subr.mxu0 0.0
    %1753 = vmatpush1.msra.mxu0 0.0
    %1754 = vmatprep.subr.mxu0 0.0
    %1755 = vmatpush1.msra.mxu0 0.0
    %1756 = vmatprep.subr.mxu0 0.0
    %1757 = vmatpush1.msra.mxu0 0.0
    %1758 = vmatprep.mubr.f32.mxu0 0.0
    %1759 = vmatmul.mubr.f32.gmra.mrb[0].mxu0 %v1692
    %v1760 = vpop.f32.mrb[0].mxu0
    %v1761 = vadd.f32 %v1689, %v1760
    %v1762 = vpop.f32.mrb[0].mxu0
    %1763 = vdwg.mxu0
    %1764 = vst [vmem:[#allocation2] sm:$0xff] %v1761
    // Predicated region
    $region18: #{tpu_custom_call.1} parent=1 // pred_check
      _
    $region19: #{tpu_custom_call.1} parent=1 // pred_check_branch
      %1766 = sbr.rel (0) target = $region21
    $region20: #{tpu_custom_call.1} parent=1 // pred_region
      %s1768 = ssub.s32 128, 128
      %1769 = vsyncadd [#allocation3], %s1768
      %s1771 = sshll.u32 [#allocation2], 4
      %s1772 = int_to_ptr.vmem [resolvable:$true] %s1771
      %1774 = dma.vmem_to_hbm [thread:$0]  %s1772, 128, %s4, [#allocation3]
    $region21: #{tpu_custom_call.1} parent=1 // pred_fallthru
      _
    // Predicated region
    $region22: #{tpu_custom_call.1} parent=1 // pred_check
      _
    $region23: #{tpu_custom_call.1} parent=1 // pred_check_branch
      %1776 = sbr.rel (0) target = $region25
    $region24: #{tpu_custom_call.1} parent=1 // pred_region
      %1777 = dma.done [#allocation3], 128
    $region25: #{tpu_custom_call.1} parent=1 // pred_fallthru
      _
    %1778 = vsyncpa [#allocation3], 1

</llo_original>
